<compile_context>
chip_gen: v7x
topology: tpu7x:2x2x1
jax: 0.10.0
libtpu: 0.0.40
codegen_flags: <defaults>
</compile_context>

<pallas_src>
import functools
import math

import jax
import jax.numpy as jnp
from jax.experimental import pallas as pl
from jax.experimental.pallas import tpu as pltpu


def _rmsnorm(v, g, eps=1e-6):
    # f32 elementwise; cast to bf16 only at the matmul boundary.
    ms = jnp.mean(v * v, axis=-1, keepdims=True)
    return v * jax.lax.rsqrt(ms + eps) * g


def _bdot(a_f32, w_bf16):
    # bf16 MXU inputs, f32 accumulation.
    return jnp.dot(a_f32.astype(jnp.bfloat16), w_bf16,
                   preferred_element_type=jnp.float32)


def llama_block_kernel(x_ref, gmha_ref, wq_ref, wk_ref, wv_ref, wo_ref,
                       gffn_ref, wg_ref, wu_ref, wd_ref, cos_ref, sin_ref,
                       o_ref, *, num_heads, head_dim):
    x = x_ref[0]                                    # (S, D) f32
    S, D = x.shape
    scale = 1.0 / math.sqrt(head_dim)
    bf16 = jnp.bfloat16

    # ---- pre-attention RMSNorm ----
    xn = _rmsnorm(x, gmha_ref[...])                 # g broadcasts from (1, D)

    # ---- QKV projections (bf16 MXU, f32 accumulate) ----
    q = _bdot(xn, wq_ref[...])                      # (S, D) f32
    k = _bdot(xn, wk_ref[...])
    v = _bdot(xn, wv_ref[...])

    # ---- head-batched layout (H, S, hd); heads handled by one dot_general ----
    q3 = jnp.transpose(q.reshape(S, num_heads, head_dim), (1, 0, 2))
    k3 = jnp.transpose(k.reshape(S, num_heads, head_dim), (1, 0, 2))
    v3 = jnp.transpose(v.reshape(S, num_heads, head_dim), (1, 0, 2))

    cos = cos_ref[...][None, :, :]                  # (1, S, hd) -> broadcast over H
    sin = sin_ref[...][None, :, :]

    def rope(t):                                    # called once for Q, once for K
        t1 = t[..., : head_dim // 2]
        t2 = t[..., head_dim // 2:]
        rot = jnp.concatenate([-t2, t1], axis=-1)
        return t * cos + rot * sin

    # fold the 1/sqrt(hd) scale into Q (S*hd mults vs S*S on the scores)
    qh = (rope(q3) * scale).astype(bf16)            # (H, S, hd)
    kh = rope(k3).astype(bf16)
    vh = v3.astype(bf16)

    # ---- causal attention, all heads in one batched MXU contraction ----
    s = jnp.einsum("hqd,hkd->hqk", qh, kh,
                   preferred_element_type=jnp.float32)          # (H, S, S) f32
    row = jax.lax.broadcasted_iota(jnp.int32, (S, S), 0)        # (S, S), bcast over H
    col = jax.lax.broadcasted_iota(jnp.int32, (S, S), 1)
    s = jnp.where((col <= row)[None, :, :], s, -1e30)
    m = jnp.max(s, axis=-1, keepdims=True)
    p = jnp.exp(s - m)
    p = p * pl.reciprocal(jnp.sum(p, axis=-1, keepdims=True), approx=True)
    o = jnp.einsum("hqk,hkd->hqd", p.astype(bf16), vh,
                   preferred_element_type=jnp.float32)          # (H, S, hd)

    attn = jnp.transpose(o, (1, 0, 2)).reshape(S, D)            # (S, D)
    attn = _bdot(attn, wo_ref[...])                             # output projection
    h_res = x + attn                                            # residual 1 (f32)

    # ---- pre-FFN RMSNorm + SwiGLU MLP ----
    hn = _rmsnorm(h_res, gffn_ref[...])
    gate = _bdot(hn, wg_ref[...])
    up = _bdot(hn, wu_ref[...])
    act = gate * jax.nn.sigmoid(gate)               # SiLU in f32 (EUP sigmoid)
    down = _bdot(act * up, wd_ref[...])

    o_ref[0] = h_res + down                         # residual 2


def llama_kinda_block(x, params, cos, sin, *, num_heads):
    B, S, D = x.shape
    head_dim = D // num_heads
    hidden = params["wg"].shape[1]

    bf = lambda w: w.astype(jnp.bfloat16)
    const2d = lambda r, c: pl.BlockSpec((r, c), lambda b: (0, 0))
    kernel = functools.partial(llama_block_kernel,
                               num_heads=num_heads, head_dim=head_dim)

    return pl.pallas_call(
        kernel,
        out_shape=jax.ShapeDtypeStruct((B, S, D), jnp.float32),
        grid_spec=pltpu.PrefetchScalarGridSpec(
            num_scalar_prefetch=0,
            grid=(B,),
            in_specs=[
                pl.BlockSpec((1, S, D), lambda b: (b, 0, 0)),        # x
                const2d(1, D),                                       # g_mha (f32)
                const2d(D, D), const2d(D, D), const2d(D, D), const2d(D, D),  # wq wk wv wo
                const2d(1, D),                                       # g_ffn (f32)
                const2d(D, hidden), const2d(D, hidden), const2d(hidden, D),  # wg wu wd
                const2d(S, head_dim), const2d(S, head_dim),          # cos, sin (f32)
            ],
            out_specs=pl.BlockSpec((1, S, D), lambda b: (b, 0, 0)),
        ),
        compiler_params=pltpu.CompilerParams(
            dimension_semantics=("parallel",)),     # B=2 feeds both v7x TCs
    )(x, params["g_mha"],
      bf(params["wq"]), bf(params["wk"]), bf(params["wv"]), bf(params["wo"]),
      params["g_ffn"],
      bf(params["wg"]), bf(params["wu"]), bf(params["wd"]),
      cos, sin)


# ---------------- pure-JAX reference (mimics the bf16 matmul boundaries) ----------------
def reference_block(x, params, cos, sin, *, num_heads):
    B, S, D = x.shape
    hd = D // num_heads
    scale = 1.0 / math.sqrt(hd)
    bf16 = jnp.bfloat16
    bd = lambda a, w: jnp.einsum("...k,kn->...n", a.astype(bf16), w.astype(bf16),
                                 preferred_element_type=jnp.float32)

    def rope(t):  # t: (B, H, S, hd); cos/sin broadcast over (B, H)
        t1, t2 = t[..., : hd // 2], t[..., hd // 2:]
        rot = jnp.concatenate([-t2, t1], axis=-1)
        return t * cos + rot * sin

    xn = _rmsnorm(x, params["g_mha"][0])
    q = bd(xn, params["wq"]).reshape(B, S, num_heads, hd).transpose(0, 2, 1, 3)
    k = bd(xn, params["wk"]).reshape(B, S, num_heads, hd).transpose(0, 2, 1, 3)
    v = bd(xn, params["wv"]).reshape(B, S, num_heads, hd).transpose(0, 2, 1, 3)
    q, k = rope(q) * scale, rope(k)
    s = jnp.einsum("bhqd,bhkd->bhqk", q.astype(bf16), k.astype(bf16),
                   preferred_element_type=jnp.float32)
    mask = jnp.tril(jnp.ones((S, S), bool))
    s = jnp.where(mask, s, -1e30)
    p = jax.nn.softmax(s, axis=-1)
    attn = jnp.einsum("bhqk,bhkd->bhqd", p.astype(bf16), v.astype(bf16),
                      preferred_element_type=jnp.float32)
    attn = attn.transpose(0, 2, 1, 3).reshape(B, S, D)
    h = x + bd(attn, params["wo"])
    hn = _rmsnorm(h, params["g_ffn"][0])
    gate, up = bd(hn, params["wg"]), bd(hn, params["wu"])
    return h + bd(jax.nn.silu(gate) * up, params["wd"])


if __name__ == "__main__":
    # LlamaConfig: dim=32, max_cntx=8, num_heads=4, act_fn=SiLU, expansion_factor=2
    B, S, D, H, EXP = 2, 8, 32, 4, 2
    HID = D * EXP
    hd = D // H

    key = jax.random.PRNGKey(0)
    ks = jax.random.split(key, 8)
    init = lambda k, shape: (jax.random.normal(k, shape, jnp.float32)
                             * (1.0 / math.sqrt(shape[0])))
    params = {
        "g_mha": jnp.ones((1, D), jnp.float32),
        "wq": init(ks[0], (D, D)),
        "wk": init(ks[1], (D, D)),
        "wv": init(ks[2], (D, D)),
        "wo": init(ks[3], (D, D)),
        "g_ffn": jnp.ones((1, D), jnp.float32),
        "wg": init(ks[4], (D, HID)),
        "wu": init(ks[5], (D, HID)),
        "wd": init(ks[6], (HID, D)),
    }
    x = jax.random.normal(ks[7], (B, S, D), jnp.float32)

    # RoPE tables (Llama rotate_half convention), positions 0..S-1
    inv_freq = 1.0 / (10000.0 ** (jnp.arange(0, hd, 2, dtype=jnp.float32) / hd))
    angles = jnp.arange(S, dtype=jnp.float32)[:, None] * inv_freq[None, :]
    cos = jnp.concatenate([jnp.cos(angles), jnp.cos(angles)], axis=-1)  # (S, hd)
    sin = jnp.concatenate([jnp.sin(angles), jnp.sin(angles)], axis=-1)

    out = llama_kinda_block(x, params, cos, sin, num_heads=H)
    out = jax.block_until_ready(out)

    ref = reference_block(x, params, cos, sin, num_heads=H)
    assert out.shape == (B, S, D)
    max_err = float(jnp.max(jnp.abs(out - ref)))
    assert jnp.allclose(out, ref, atol=2e-2, rtol=2e-2), max_err
    print("KERNEL_OK")
</pallas_src>

<mosaic_0001>
module attributes {stable_mosaic.version = 11 : i64} {
  func.func @llama_block_kernel(%arg0: i32, %arg1: memref<1x8x32xf32, #tpu.memory_space<vmem>>, %arg2: memref<1x32xf32, #tpu.memory_space<vmem>>, %arg3: memref<32x32xbf16, #tpu.memory_space<vmem>>, %arg4: memref<32x32xbf16, #tpu.memory_space<vmem>>, %arg5: memref<32x32xbf16, #tpu.memory_space<vmem>>, %arg6: memref<32x32xbf16, #tpu.memory_space<vmem>>, %arg7: memref<1x32xf32, #tpu.memory_space<vmem>>, %arg8: memref<32x64xbf16, #tpu.memory_space<vmem>>, %arg9: memref<32x64xbf16, #tpu.memory_space<vmem>>, %arg10: memref<64x32xbf16, #tpu.memory_space<vmem>>, %arg11: memref<8x8xf32, #tpu.memory_space<vmem>>, %arg12: memref<8x8xf32, #tpu.memory_space<vmem>>, %arg13: memref<1x8x32xf32, #tpu.memory_space<vmem>>) attributes {dimension_semantics = [#tpu.dimension_semantics<parallel>], iteration_bounds = array<i64: 2>, scalar_prefetch = 0 : i64, scratch_operands = 0 : i64, tpu.core_type = #tpu.core_type<tc>, window_params = [{transform_indices = @transform_0, window_bounds = array<i64: 1, 8, 32>}, {pipeline_mode = #tpu.pipeline_mode<synchronous>, transform_indices = @transform_1, window_bounds = array<i64: 1, 32>}, {pipeline_mode = #tpu.pipeline_mode<synchronous>, transform_indices = @transform_2, window_bounds = array<i64: 32, 32>}, {pipeline_mode = #tpu.pipeline_mode<synchronous>, transform_indices = @transform_3, window_bounds = array<i64: 32, 32>}, {pipeline_mode = #tpu.pipeline_mode<synchronous>, transform_indices = @transform_4, window_bounds = array<i64: 32, 32>}, {pipeline_mode = #tpu.pipeline_mode<synchronous>, transform_indices = @transform_5, window_bounds = array<i64: 32, 32>}, {pipeline_mode = #tpu.pipeline_mode<synchronous>, transform_indices = @transform_6, window_bounds = array<i64: 1, 32>}, {pipeline_mode = #tpu.pipeline_mode<synchronous>, transform_indices = @transform_7, window_bounds = array<i64: 32, 64>}, {pipeline_mode = #tpu.pipeline_mode<synchronous>, transform_indices = @transform_8, window_bounds = array<i64: 32, 64>}, {pipeline_mode = #tpu.pipeline_mode<synchronous>, transform_indices = @transform_9, window_bounds = array<i64: 64, 32>}, {pipeline_mode = #tpu.pipeline_mode<synchronous>, transform_indices = @transform_10, window_bounds = array<i64: 8, 8>}, {pipeline_mode = #tpu.pipeline_mode<synchronous>, transform_indices = @transform_11, window_bounds = array<i64: 8, 8>}, {transform_indices = @transform_12, window_bounds = array<i64: 1, 8, 32>}]} {
    %c0 = arith.constant 0 : index
    %c0_0 = arith.constant 0 : index
    %c0_1 = arith.constant 0 : index
    %0 = vector.load %arg1[%c0, %c0_0, %c0_1] : memref<1x8x32xf32, #tpu.memory_space<vmem>>, vector<1x8x32xf32>
    %1 = vector.shape_cast %0 : vector<1x8x32xf32> to vector<8x32xf32>
    %c0_2 = arith.constant 0 : index
    %c0_3 = arith.constant 0 : index
    %2 = vector.load %arg2[%c0_2, %c0_3] : memref<1x32xf32, #tpu.memory_space<vmem>>, vector<1x32xf32>
    %3 = arith.mulf %1, %1 : vector<8x32xf32>
    %cst = arith.constant dense<0.000000e+00> : vector<8xf32>
    %4 = vector.multi_reduction <add>, %3, %cst [1] : vector<8x32xf32> to vector<8xf32>
    %5 = vector.shape_cast %4 : vector<8xf32> to vector<8x1xf32>
    %cst_4 = arith.constant 3.200000e+01 : f32
    %6 = vector.broadcast %cst_4 : f32 to vector<8x1xf32>
    %7 = arith.divf %5, %6 : vector<8x1xf32>
    %cst_5 = arith.constant 9.99999997E-7 : f32
    %8 = vector.broadcast %cst_5 : f32 to vector<8x1xf32>
    %9 = arith.addf %7, %8 : vector<8x1xf32>
    %10 = math.rsqrt %9 : vector<8x1xf32>
    %11 = vector.broadcast %10 : vector<8x1xf32> to vector<8x32xf32>
    %12 = arith.mulf %1, %11 : vector<8x32xf32>
    %13 = vector.broadcast %2 : vector<1x32xf32> to vector<8x32xf32>
    %14 = arith.mulf %12, %13 : vector<8x32xf32>
    %c0_6 = arith.constant 0 : index
    %c0_7 = arith.constant 0 : index
    %15 = vector.load %arg3[%c0_6, %c0_7] : memref<32x32xbf16, #tpu.memory_space<vmem>>, vector<32x32xbf16>
    %16 = arith.truncf %14 : vector<8x32xf32> to vector<8x32xbf16>
    %cst_8 = arith.constant dense<0.000000e+00> : vector<8x32xf32>
    %17 = tpu.matmul %16, %15, %cst_8 {dimension_numbers = #tpu.dot_dimension_numbers<[1], [0], [0], [1], [0, 0, 1, 1], [], []>} : vector<8x32xbf16>, vector<32x32xbf16>, vector<8x32xf32> -> vector<8x32xf32>
    %c0_9 = arith.constant 0 : index
    %c0_10 = arith.constant 0 : index
    %18 = vector.load %arg4[%c0_9, %c0_10] : memref<32x32xbf16, #tpu.memory_space<vmem>>, vector<32x32xbf16>
    %19 = arith.truncf %14 : vector<8x32xf32> to vector<8x32xbf16>
    %cst_11 = arith.constant dense<0.000000e+00> : vector<8x32xf32>
    %20 = tpu.matmul %19, %18, %cst_11 {dimension_numbers = #tpu.dot_dimension_numbers<[1], [0], [0], [1], [0, 0, 1, 1], [], []>} : vector<8x32xbf16>, vector<32x32xbf16>, vector<8x32xf32> -> vector<8x32xf32>
    %c0_12 = arith.constant 0 : index
    %c0_13 = arith.constant 0 : index
    %21 = vector.load %arg5[%c0_12, %c0_13] : memref<32x32xbf16, #tpu.memory_space<vmem>>, vector<32x32xbf16>
    %22 = arith.truncf %14 : vector<8x32xf32> to vector<8x32xbf16>
    %cst_14 = arith.constant dense<0.000000e+00> : vector<8x32xf32>
    %23 = tpu.matmul %22, %21, %cst_14 {dimension_numbers = #tpu.dot_dimension_numbers<[1], [0], [0], [1], [0, 0, 1, 1], [], []>} : vector<8x32xbf16>, vector<32x32xbf16>, vector<8x32xf32> -> vector<8x32xf32>
    %24 = vector.shape_cast %17 : vector<8x32xf32> to vector<8x4x8xf32>
    %25 = tpu.transpose %24, [1, 0, 2] : vector<8x4x8xf32> -> vector<4x8x8xf32>
    %26 = vector.shape_cast %20 : vector<8x32xf32> to vector<8x4x8xf32>
    %27 = tpu.transpose %26, [1, 0, 2] : vector<8x4x8xf32> -> vector<4x8x8xf32>
    %28 = vector.shape_cast %23 : vector<8x32xf32> to vector<8x4x8xf32>
    %29 = tpu.transpose %28, [1, 0, 2] : vector<8x4x8xf32> -> vector<4x8x8xf32>
    %c0_15 = arith.constant 0 : index
    %c0_16 = arith.constant 0 : index
    %30 = vector.load %arg11[%c0_15, %c0_16] : memref<8x8xf32, #tpu.memory_space<vmem>>, vector<8x8xf32>
    %31 = vector.shape_cast %30 : vector<8x8xf32> to vector<1x8x8xf32>
    %c0_17 = arith.constant 0 : index
    %c0_18 = arith.constant 0 : index
    %32 = vector.load %arg12[%c0_17, %c0_18] : memref<8x8xf32, #tpu.memory_space<vmem>>, vector<8x8xf32>
    %33 = vector.shape_cast %32 : vector<8x8xf32> to vector<1x8x8xf32>
    %34 = vector.extract_strided_slice %25 {offsets = [0, 0, 0], sizes = [4, 8, 4], strides = [1, 1, 1]} : vector<4x8x8xf32> to vector<4x8x4xf32>
    %35 = vector.extract_strided_slice %25 {offsets = [0, 0, 4], sizes = [4, 8, 4], strides = [1, 1, 1]} : vector<4x8x8xf32> to vector<4x8x4xf32>
    %cst_19 = arith.constant 0.000000e+00 : f32
    %36 = vector.broadcast %cst_19 : f32 to vector<4x8x4xf32>
    %37 = arith.subf %36, %35 : vector<4x8x4xf32>
    %38 = tpu.concatenate %37, %34 in 2 : vector<4x8x4xf32>, vector<4x8x4xf32> -> vector<4x8x8xf32>
    %39 = vector.broadcast %31 : vector<1x8x8xf32> to vector<4x8x8xf32>
    %40 = arith.mulf %25, %39 : vector<4x8x8xf32>
    %41 = vector.broadcast %33 : vector<1x8x8xf32> to vector<4x8x8xf32>
    %42 = arith.mulf %38, %41 : vector<4x8x8xf32>
    %43 = arith.addf %40, %42 : vector<4x8x8xf32>
    %cst_20 = arith.constant 0.353553385 : f32
    %44 = vector.broadcast %cst_20 : f32 to vector<4x8x8xf32>
    %45 = arith.mulf %43, %44 : vector<4x8x8xf32>
    %46 = arith.truncf %45 : vector<4x8x8xf32> to vector<4x8x8xbf16>
    %47 = vector.extract_strided_slice %27 {offsets = [0, 0, 0], sizes = [4, 8, 4], strides = [1, 1, 1]} : vector<4x8x8xf32> to vector<4x8x4xf32>
    %48 = vector.extract_strided_slice %27 {offsets = [0, 0, 4], sizes = [4, 8, 4], strides = [1, 1, 1]} : vector<4x8x8xf32> to vector<4x8x4xf32>
    %cst_21 = arith.constant 0.000000e+00 : f32
    %49 = vector.broadcast %cst_21 : f32 to vector<4x8x4xf32>
    %50 = arith.subf %49, %48 : vector<4x8x4xf32>
    %51 = tpu.concatenate %50, %47 in 2 : vector<4x8x4xf32>, vector<4x8x4xf32> -> vector<4x8x8xf32>
    %52 = vector.broadcast %31 : vector<1x8x8xf32> to vector<4x8x8xf32>
    %53 = arith.mulf %27, %52 : vector<4x8x8xf32>
    %54 = vector.broadcast %33 : vector<1x8x8xf32> to vector<4x8x8xf32>
    %55 = arith.mulf %51, %54 : vector<4x8x8xf32>
    %56 = arith.addf %53, %55 : vector<4x8x8xf32>
    %57 = arith.truncf %56 : vector<4x8x8xf32> to vector<4x8x8xbf16>
    %58 = arith.truncf %29 : vector<4x8x8xf32> to vector<4x8x8xbf16>
    "tpu.trace_start"() <{level = 10 : i32, message = "hqd,hkd->hqk"}> : () -> ()
    %cst_22 = arith.constant dense<0.000000e+00> : vector<4x8x8xf32>
    %59 = tpu.matmul %46, %57, %cst_22 {dimension_numbers = #tpu.dot_dimension_numbers<[2], [2], [1], [1], [0, 0, 0, 1, 1, 1], [0], [0]>} : vector<4x8x8xbf16>, vector<4x8x8xbf16>, vector<4x8x8xf32> -> vector<4x8x8xf32>
    "tpu.trace_stop"() : () -> ()
    %60 = tpu.iota {dimensions = array<i32: 0>} : vector<8x8xi32>
    %61 = tpu.iota {dimensions = array<i32: 1>} : vector<8x8xi32>
    %62 = arith.cmpi sle, %61, %60 : vector<8x8xi32>
    %63 = vector.shape_cast %62 : vector<8x8xi1> to vector<1x8x8xi1>
    %cst_23 = arith.constant -1.000000e+30 : f32
    %64 = vector.shape_cast %63 : vector<1x8x8xi1> to vector<1x8x8xi1>
    %65 = vector.broadcast %64 : vector<1x8x8xi1> to vector<4x8x8xi1>
    %66 = vector.broadcast %cst_23 : f32 to vector<4x8x8xf32>
    %67 = arith.select %65, %59, %66 : vector<4x8x8xi1>, vector<4x8x8xf32>
    %cst_24 = arith.constant dense<0xFF800000> : vector<4x8xf32>
    %68 = vector.multi_reduction <maximumf>, %67, %cst_24 [2] : vector<4x8x8xf32> to vector<4x8xf32>
    %69 = vector.shape_cast %68 : vector<4x8xf32> to vector<4x8x1xf32>
    %70 = vector.broadcast %69 : vector<4x8x1xf32> to vector<4x8x8xf32>
    %71 = arith.subf %67, %70 : vector<4x8x8xf32>
    %72 = math.exp %71 : vector<4x8x8xf32>
    %cst_25 = arith.constant dense<0.000000e+00> : vector<4x8xf32>
    %73 = vector.multi_reduction <add>, %72, %cst_25 [2] : vector<4x8x8xf32> to vector<4x8xf32>
    %74 = vector.shape_cast %73 : vector<4x8xf32> to vector<4x8x1xf32>
    %75 = tpu.reciprocal %74 {approx = true} : vector<4x8x1xf32> -> vector<4x8x1xf32>
    %76 = vector.broadcast %75 : vector<4x8x1xf32> to vector<4x8x8xf32>
    %77 = arith.mulf %72, %76 : vector<4x8x8xf32>
    %78 = arith.truncf %77 : vector<4x8x8xf32> to vector<4x8x8xbf16>
    "tpu.trace_start"() <{level = 10 : i32, message = "hqk,hkd->hqd"}> : () -> ()
    %cst_26 = arith.constant dense<0.000000e+00> : vector<4x8x8xf32>
    %79 = tpu.matmul %78, %58, %cst_26 {dimension_numbers = #tpu.dot_dimension_numbers<[2], [1], [1], [2], [0, 0, 0, 1, 1, 2], [0], [0]>} : vector<4x8x8xbf16>, vector<4x8x8xbf16>, vector<4x8x8xf32> -> vector<4x8x8xf32>
    "tpu.trace_stop"() : () -> ()
    %80 = tpu.transpose %79, [1, 0, 2] : vector<4x8x8xf32> -> vector<8x4x8xf32>
    %81 = vector.shape_cast %80 : vector<8x4x8xf32> to vector<8x32xf32>
    %c0_27 = arith.constant 0 : index
    %c0_28 = arith.constant 0 : index
    %82 = vector.load %arg6[%c0_27, %c0_28] : memref<32x32xbf16, #tpu.memory_space<vmem>>, vector<32x32xbf16>
    %83 = arith.truncf %81 : vector<8x32xf32> to vector<8x32xbf16>
    %cst_29 = arith.constant dense<0.000000e+00> : vector<8x32xf32>
    %84 = tpu.matmul %83, %82, %cst_29 {dimension_numbers = #tpu.dot_dimension_numbers<[1], [0], [0], [1], [0, 0, 1, 1], [], []>} : vector<8x32xbf16>, vector<32x32xbf16>, vector<8x32xf32> -> vector<8x32xf32>
    %85 = arith.addf %1, %84 : vector<8x32xf32>
    %c0_30 = arith.constant 0 : index
    %c0_31 = arith.constant 0 : index
    %86 = vector.load %arg7[%c0_30, %c0_31] : memref<1x32xf32, #tpu.memory_space<vmem>>, vector<1x32xf32>
    %87 = arith.mulf %85, %85 : vector<8x32xf32>
    %cst_32 = arith.constant dense<0.000000e+00> : vector<8xf32>
    %88 = vector.multi_reduction <add>, %87, %cst_32 [1] : vector<8x32xf32> to vector<8xf32>
    %89 = vector.shape_cast %88 : vector<8xf32> to vector<8x1xf32>
    %cst_33 = arith.constant 3.200000e+01 : f32
    %90 = vector.broadcast %cst_33 : f32 to vector<8x1xf32>
    %91 = arith.divf %89, %90 : vector<8x1xf32>
    %cst_34 = arith.constant 9.99999997E-7 : f32
    %92 = vector.broadcast %cst_34 : f32 to vector<8x1xf32>
    %93 = arith.addf %91, %92 : vector<8x1xf32>
    %94 = math.rsqrt %93 : vector<8x1xf32>
    %95 = vector.broadcast %94 : vector<8x1xf32> to vector<8x32xf32>
    %96 = arith.mulf %85, %95 : vector<8x32xf32>
    %97 = vector.broadcast %86 : vector<1x32xf32> to vector<8x32xf32>
    %98 = arith.mulf %96, %97 : vector<8x32xf32>
    %c0_35 = arith.constant 0 : index
    %c0_36 = arith.constant 0 : index
    %99 = vector.load %arg8[%c0_35, %c0_36] : memref<32x64xbf16, #tpu.memory_space<vmem>>, vector<32x64xbf16>
    %100 = arith.truncf %98 : vector<8x32xf32> to vector<8x32xbf16>
    %cst_37 = arith.constant dense<0.000000e+00> : vector<8x64xf32>
    %101 = tpu.matmul %100, %99, %cst_37 {dimension_numbers = #tpu.dot_dimension_numbers<[1], [0], [0], [1], [0, 0, 1, 1], [], []>} : vector<8x32xbf16>, vector<32x64xbf16>, vector<8x64xf32> -> vector<8x64xf32>
    %c0_38 = arith.constant 0 : index
    %c0_39 = arith.constant 0 : index
    %102 = vector.load %arg9[%c0_38, %c0_39] : memref<32x64xbf16, #tpu.memory_space<vmem>>, vector<32x64xbf16>
    %103 = arith.truncf %98 : vector<8x32xf32> to vector<8x32xbf16>
    %cst_40 = arith.constant dense<0.000000e+00> : vector<8x64xf32>
    %104 = tpu.matmul %103, %102, %cst_40 {dimension_numbers = #tpu.dot_dimension_numbers<[1], [0], [0], [1], [0, 0, 1, 1], [], []>} : vector<8x32xbf16>, vector<32x64xbf16>, vector<8x64xf32> -> vector<8x64xf32>
    %105 = arith.negf %101 : vector<8x64xf32>
    %106 = math.exp %105 : vector<8x64xf32>
    %cst_41 = arith.constant 1.000000e+00 : f32
    %107 = vector.broadcast %cst_41 : f32 to vector<8x64xf32>
    %108 = arith.addf %107, %106 : vector<8x64xf32>
    %109 = arith.divf %107, %108 : vector<8x64xf32>
    %110 = arith.mulf %101, %109 : vector<8x64xf32>
    %111 = arith.mulf %110, %104 : vector<8x64xf32>
    %c0_42 = arith.constant 0 : index
    %c0_43 = arith.constant 0 : index
    %112 = vector.load %arg10[%c0_42, %c0_43] : memref<64x32xbf16, #tpu.memory_space<vmem>>, vector<64x32xbf16>
    %113 = arith.truncf %111 : vector<8x64xf32> to vector<8x64xbf16>
    %cst_44 = arith.constant dense<0.000000e+00> : vector<8x32xf32>
    %114 = tpu.matmul %113, %112, %cst_44 {dimension_numbers = #tpu.dot_dimension_numbers<[1], [0], [0], [1], [0, 0, 1, 1], [], []>} : vector<8x64xbf16>, vector<64x32xbf16>, vector<8x32xf32> -> vector<8x32xf32>
    %115 = arith.addf %85, %114 : vector<8x32xf32>
    %c0_45 = arith.constant 0 : index
    %c0_46 = arith.constant 0 : index
    %c0_47 = arith.constant 0 : index
    %116 = vector.load %arg13[%c0_45, %c0_46, %c0_47] : memref<1x8x32xf32, #tpu.memory_space<vmem>>, vector<1x8x32xf32>
    %117 = vector.shape_cast %116 : vector<1x8x32xf32> to vector<8x32xf32>
    %118 = vector.shape_cast %115 : vector<8x32xf32> to vector<1x8x32xf32>
    tpu.vector_store %arg13[%c0_45, %c0_46, %c0_47], %118 {strides = array<i32>} : memref<1x8x32xf32, #tpu.memory_space<vmem>>, vector<1x8x32xf32>,
    return
  }
  func.func @transform_0(%arg0: i32) -> (i32, i32, i32) {
    %c0_i32 = arith.constant 0 : i32
    %c0_i32_0 = arith.constant 0 : i32
    %c0_i32_1 = arith.constant 0 : i32
    return %arg0, %c0_i32, %c0_i32_0 : i32, i32, i32
  }
  func.func @transform_1(%arg0: i32) -> (i32, i32) {
    %c0_i32 = arith.constant 0 : i32
    %c0_i32_0 = arith.constant 0 : i32
    %c0_i32_1 = arith.constant 0 : i32
    return %c0_i32, %c0_i32_0 : i32, i32
  }
  func.func @transform_2(%arg0: i32) -> (i32, i32) {
    %c0_i32 = arith.constant 0 : i32
    %c0_i32_0 = arith.constant 0 : i32
    %c0_i32_1 = arith.constant 0 : i32
    return %c0_i32, %c0_i32_0 : i32, i32
  }
  func.func @transform_3(%arg0: i32) -> (i32, i32) {
    %c0_i32 = arith.constant 0 : i32
    %c0_i32_0 = arith.constant 0 : i32
    %c0_i32_1 = arith.constant 0 : i32
    return %c0_i32, %c0_i32_0 : i32, i32
  }
  func.func @transform_4(%arg0: i32) -> (i32, i32) {
    %c0_i32 = arith.constant 0 : i32
    %c0_i32_0 = arith.constant 0 : i32
    %c0_i32_1 = arith.constant 0 : i32
    return %c0_i32, %c0_i32_0 : i32, i32
  }
  func.func @transform_5(%arg0: i32) -> (i32, i32) {
    %c0_i32 = arith.constant 0 : i32
    %c0_i32_0 = arith.constant 0 : i32
    %c0_i32_1 = arith.constant 0 : i32
    return %c0_i32, %c0_i32_0 : i32, i32
  }
  func.func @transform_6(%arg0: i32) -> (i32, i32) {
    %c0_i32 = arith.constant 0 : i32
    %c0_i32_0 = arith.constant 0 : i32
    %c0_i32_1 = arith.constant 0 : i32
    return %c0_i32, %c0_i32_0 : i32, i32
  }
  func.func @transform_7(%arg0: i32) -> (i32, i32) {
    %c0_i32 = arith.constant 0 : i32
    %c0_i32_0 = arith.constant 0 : i32
    %c0_i32_1 = arith.constant 0 : i32
    return %c0_i32, %c0_i32_0 : i32, i32
  }
  func.func @transform_8(%arg0: i32) -> (i32, i32) {
    %c0_i32 = arith.constant 0 : i32
    %c0_i32_0 = arith.constant 0 : i32
    %c0_i32_1 = arith.constant 0 : i32
    return %c0_i32, %c0_i32_0 : i32, i32
  }
  func.func @transform_9(%arg0: i32) -> (i32, i32) {
    %c0_i32 = arith.constant 0 : i32
    %c0_i32_0 = arith.constant 0 : i32
    %c0_i32_1 = arith.constant 0 : i32
    return %c0_i32, %c0_i32_0 : i32, i32
  }
  func.func @transform_10(%arg0: i32) -> (i32, i32) {
    %c0_i32 = arith.constant 0 : i32
    %c0_i32_0 = arith.constant 0 : i32
    %c0_i32_1 = arith.constant 0 : i32
    return %c0_i32, %c0_i32_0 : i32, i32
  }
  func.func @transform_11(%arg0: i32) -> (i32, i32) {
    %c0_i32 = arith.constant 0 : i32
    %c0_i32_0 = arith.constant 0 : i32
    %c0_i32_1 = arith.constant 0 : i32
    return %c0_i32, %c0_i32_0 : i32, i32
  }
  func.func @transform_12(%arg0: i32) -> (i32, i32, i32) {
    %c0_i32 = arith.constant 0 : i32
    %c0_i32_0 = arith.constant 0 : i32
    %c0_i32_1 = arith.constant 0 : i32
    return %arg0, %c0_i32, %c0_i32_0 : i32, i32, i32
  }
}

</mosaic_0001>

<llo_original>
// kernel: tpu_custom_call.1
$region0: #{tpu_custom_call.1}
  #allocation0 [shape = 'u32[]', space=smem, size = 0x4, offset = 0x4, fixed_abs, tag = 'smem constant byte address 0x4 - core index']
  #allocation1 [shape = 'u32[144,128]{1,0:T(1,128)}', space=vmem, size = 0x12000, scoped, tag = 'internal scratch']
  %s0 = inlined_call_operand.vmem [shape: f32[2,8,32], index: 0, kind: input, shape index: {}]
  %s1 = inlined_call_operand.vmem [shape: f32[1,32], index: 1, kind: input, shape index: {}]
  %s2 = inlined_call_operand.vmem [shape: bf16[32,32], index: 2, kind: input, shape index: {}]
  %s3 = inlined_call_operand.vmem [shape: bf16[32,32], index: 3, kind: input, shape index: {}]
  %s4 = inlined_call_operand.hbm [shape: bf16[32,32], index: 4, kind: input, shape index: {}]
  %s5 = inlined_call_operand.hbm [shape: bf16[32,32], index: 5, kind: input, shape index: {}]
  %s6 = inlined_call_operand.vmem [shape: f32[1,32], index: 6, kind: input, shape index: {}]
  %s7 = inlined_call_operand.hbm [shape: bf16[32,64], index: 7, kind: input, shape index: {}]
  %s8 = inlined_call_operand.hbm [shape: bf16[32,64], index: 8, kind: input, shape index: {}]
  %s9 = inlined_call_operand.vmem [shape: bf16[64,32], index: 9, kind: input, shape index: {}]
  %s10 = inlined_call_operand.vmem [shape: f32[8,8], index: 10, kind: input, shape index: {}]
  %s11 = inlined_call_operand.vmem [shape: f32[8,8], index: 11, kind: input, shape index: {}]
  %s12 = inlined_call_operand.hbm [shape: f32[2,8,32], index: 12, kind: output, shape index: {}]
  %s13 = sld [smem:[#allocation0]]
  $region97: #{tpu_custom_call.1} parent=0
    _
  %s15 = ssub.s32 1, %s13
  %s16 = scalar_select 0, %s15, %s13
  $region1: #{tpu_custom_call.1} parent=0
    #allocation2 [shape = 'u8[8192]{0}', space=vmem, size = 0x2000, scoped, tag = 'input window, operand 4, single buffered']
    #allocation3 [shape = 's32[2]{0}', space=sflag, size = 0x8, scoped, tag = 'scoped memory for tpu_custom_call.1']
    #allocation4 [shape = 's32[2]{0}', space=sflag, size = 0x8, scoped, tag = 'scoped memory for tpu_custom_call.1']
    #allocation5 [shape = 'u8[8192]{0}', space=vmem, size = 0x2000, scoped, tag = 'input window, operand 5, single buffered']
    #allocation6 [shape = 's32[1]{0}', space=sflag, size = 0x4, scoped, tag = 'scoped memory for tpu_custom_call.1']
    #allocation7 [shape = 'u8[8192]{0}', space=vmem, size = 0x2000, scoped, tag = 'input window, operand 7, single buffered']
    #allocation8 [shape = 'u8[8192]{0}', space=vmem, size = 0x2000, scoped, tag = 'input window, operand 8, single buffered']
    #allocation9 [shape = 's32[1]{0}', space=sflag, size = 0x4, scoped, tag = 'scoped memory for tpu_custom_call.1']
    #allocation10 [shape = 'u8[8192]{0}', space=vmem, size = 0x2000, scoped, tag = 'output window, operand 0']
    %17 = vsyncpa [#allocation3], 0
    %18 = vsyncpa [#allocation6], 0
    %19 = vsyncpa [#allocation9], 0
    %20 = vsyncpa [#allocation4], 0
    %s21 = scalar_lea.sflag [#allocation4], 1
    %22 = vsyncpa %s21, 0
    loop: start=0, step=1, limit=4
    $region2: #{tpu_custom_call.1} parent=1 // loop_pre_header
      _
    $region3: #{tpu_custom_call.1} parent=1 // loop_header
      %s24 = sphi 0, %s28
      %p25 = scmp.ge.s32.totalorder %s24, 4
      %s34 = sphi 0, %s36
      %s37 = sphi 0, %s34
      %s38 = sphi 0, %s37
      %s54 = sphi 0, %s38
      %s58 = sphi 0, %s58
      %s60 = sphi 0, %s58
      %s61 = sphi 0, %s60
      %s75 = sphi 0, %s61
      %s79 = sphi 0, %s79
      %s81 = sphi 0, %s79
      %s82 = sphi 0, %s81
      %s96 = sphi 0, %s82
      %s100 = sphi 0, %s100
      %s102 = sphi 0, %s100
      %s103 = sphi 0, %s102
      %s117 = sphi 0, %s103
      %s121 = sphi 0, %s121
      %s123 = sphi 0, %s121
      %s124 = sphi 0, %s123
      %s138 = sphi 0, %s124
      %s142 = sphi 0, %s142
      %s144 = sphi 0, %s142
      %s145 = sphi 0, %s144
      %s159 = sphi 0, %s145
      %s163 = sphi 0, %s163
      %s165 = sphi 0, %s163
      %s166 = sphi 0, %s165
      %s180 = sphi 0, %s166
      %s184 = sphi 0, %s184
      %s186 = sphi 0, %s184
      %s187 = sphi 0, %s186
      %s201 = sphi 0, %s187
      %s205 = sphi 0, %s205
      %s207 = sphi 0, %s205
      %s208 = sphi 0, %s207
      %s222 = sphi 0, %s208
      %s226 = sphi 0, %s226
      %s228 = sphi 0, %s226
      %s229 = sphi 0, %s228
      %s243 = sphi 0, %s229
      %s247 = sphi 0, %s247
      %s249 = sphi 0, %s247
      %s250 = sphi 0, %s249
      %s264 = sphi 0, %s250
      %s268 = sphi 0, %s268
      %s270 = sphi 0, %s268
      %s271 = sphi 0, %s270
      %s285 = sphi 0, %s271
      %s291 = sphi 0, %s293
      %s294 = sphi 0, %s291
      %s295 = sphi 0, %s294
      %s311 = sphi 0, %s295
    $region4: #{tpu_custom_call.1} parent=1 // loop_header_branch
      %27 = sbr.rel (%p25) target = $region8
    $region5: #{tpu_custom_call.1} parent=1 // loop_body
      %s29 = ssub.s32 %s24, 1
      %s30 = ssub.s32 %s24, 2
      %s31 = sadd.s32 %s24, 1
      %s32 = ssub.s32 %s24, %s31
      %p33 = scmp.eq.s32.totalorder %s32, 0
      %s35 = sadd.s32 %s34, 1
      %s36 = scalar_select %p33, %s34, %s35
      %p39 = pneg %p33
      %p40 = scmp.eq.s32.totalorder %s24, 1
      %p41 = por %p39, %p40
      %p42 = scmp.ne.s32.totalorder %s34, %s37
      %p43 = scmp.eq.s32.totalorder %s24, 0
      %p44 = por %p42, %p43
      %p45 = scmp.ne.s32.totalorder %s34, %s37
      %p46 = scmp.eq.s32.totalorder %s29, 1
      %p47 = por %p45, %p46
      %p48 = scmp.ne.s32.totalorder %s37, %s38
      %p49 = scmp.eq.s32.totalorder %s29, 0
      %p50 = por %p48, %p49
      %p51 = scmp.ne.s32.totalorder %s37, %s38
      %p52 = scmp.eq.s32.totalorder %s30, 1
      %p53 = por %p51, %p52
      %p55 = scmp.ne.s32.totalorder %s38, %s54
      %p56 = scmp.eq.s32.totalorder %s30, 0
      %p57 = por %p55, %p56
      %s59 = sadd.s32 %s58, 1
      %p62 = scmp.eq.s32.totalorder %s24, 1
      %p63 = scmp.ne.s32.totalorder %s58, %s60
      %p64 = scmp.eq.s32.totalorder %s24, 0
      %p65 = por %p63, %p64
      %p66 = scmp.ne.s32.totalorder %s58, %s60
      %p67 = scmp.eq.s32.totalorder %s29, 1
      %p68 = por %p66, %p67
      %p69 = scmp.ne.s32.totalorder %s60, %s61
      %p70 = scmp.eq.s32.totalorder %s29, 0
      %p71 = por %p69, %p70
      %p72 = scmp.ne.s32.totalorder %s60, %s61
      %p73 = scmp.eq.s32.totalorder %s30, 1
      %p74 = por %p72, %p73
      %p76 = scmp.ne.s32.totalorder %s61, %s75
      %p77 = scmp.eq.s32.totalorder %s30, 0
      %p78 = por %p76, %p77
      %s80 = sadd.s32 %s79, 1
      %p83 = scmp.eq.s32.totalorder %s24, 1
      %p84 = scmp.ne.s32.totalorder %s79, %s81
      %p85 = scmp.eq.s32.totalorder %s24, 0
      %p86 = por %p84, %p85
      %p87 = scmp.ne.s32.totalorder %s79, %s81
      %p88 = scmp.eq.s32.totalorder %s29, 1
      %p89 = por %p87, %p88
      %p90 = scmp.ne.s32.totalorder %s81, %s82
      %p91 = scmp.eq.s32.totalorder %s29, 0
      %p92 = por %p90, %p91
      %p93 = scmp.ne.s32.totalorder %s81, %s82
      %p94 = scmp.eq.s32.totalorder %s30, 1
      %p95 = por %p93, %p94
      %p97 = scmp.ne.s32.totalorder %s82, %s96
      %p98 = scmp.eq.s32.totalorder %s30, 0
      %p99 = por %p97, %p98
      %s101 = sadd.s32 %s100, 1
      %p104 = scmp.eq.s32.totalorder %s24, 1
      %p105 = scmp.ne.s32.totalorder %s100, %s102
      %p106 = scmp.eq.s32.totalorder %s24, 0
      %p107 = por %p105, %p106
      %p108 = scmp.ne.s32.totalorder %s100, %s102
      %p109 = scmp.eq.s32.totalorder %s29, 1
      %p110 = por %p108, %p109
      %p111 = scmp.ne.s32.totalorder %s102, %s103
      %p112 = scmp.eq.s32.totalorder %s29, 0
      %p113 = por %p111, %p112
      %p114 = scmp.ne.s32.totalorder %s102, %s103
      %p115 = scmp.eq.s32.totalorder %s30, 1
      %p116 = por %p114, %p115
      %p118 = scmp.ne.s32.totalorder %s103, %s117
      %p119 = scmp.eq.s32.totalorder %s30, 0
      %p120 = por %p118, %p119
      %s122 = sadd.s32 %s121, 1
      %p125 = scmp.eq.s32.totalorder %s24, 1
      %p126 = scmp.ne.s32.totalorder %s121, %s123
      %p127 = scmp.eq.s32.totalorder %s24, 0
      %p128 = por %p126, %p127
      %p129 = scmp.ne.s32.totalorder %s121, %s123
      %p130 = scmp.eq.s32.totalorder %s29, 1
      %p131 = por %p129, %p130
      %p132 = scmp.ne.s32.totalorder %s123, %s124
      %p133 = scmp.eq.s32.totalorder %s29, 0
      %p134 = por %p132, %p133
      %p135 = scmp.ne.s32.totalorder %s123, %s124
      %p136 = scmp.eq.s32.totalorder %s30, 1
      %p137 = por %p135, %p136
      %p139 = scmp.ne.s32.totalorder %s124, %s138
      %p140 = scmp.eq.s32.totalorder %s30, 0
      %p141 = por %p139, %p140
      %s143 = sadd.s32 %s142, 1
      %p146 = scmp.eq.s32.totalorder %s24, 1
      %p147 = scmp.ne.s32.totalorder %s142, %s144
      %p148 = scmp.eq.s32.totalorder %s24, 0
      %p149 = por %p147, %p148
      %p150 = scmp.ne.s32.totalorder %s142, %s144
      %p151 = scmp.eq.s32.totalorder %s29, 1
      %p152 = por %p150, %p151
      %p153 = scmp.ne.s32.totalorder %s144, %s145
      %p154 = scmp.eq.s32.totalorder %s29, 0
      %p155 = por %p153, %p154
      %p156 = scmp.ne.s32.totalorder %s144, %s145
      %p157 = scmp.eq.s32.totalorder %s30, 1
      %p158 = por %p156, %p157
      %p160 = scmp.ne.s32.totalorder %s145, %s159
      %p161 = scmp.eq.s32.totalorder %s30, 0
      %p162 = por %p160, %p161
      %s164 = sadd.s32 %s163, 1
      %p167 = scmp.eq.s32.totalorder %s24, 1
      %p168 = scmp.ne.s32.totalorder %s163, %s165
      %p169 = scmp.eq.s32.totalorder %s24, 0
      %p170 = por %p168, %p169
      %p171 = scmp.ne.s32.totalorder %s163, %s165
      %p172 = scmp.eq.s32.totalorder %s29, 1
      %p173 = por %p171, %p172
      %p174 = scmp.ne.s32.totalorder %s165, %s166
      %p175 = scmp.eq.s32.totalorder %s29, 0
      %p176 = por %p174, %p175
      %p177 = scmp.ne.s32.totalorder %s165, %s166
      %p178 = scmp.eq.s32.totalorder %s30, 1
      %p179 = por %p177, %p178
      %p181 = scmp.ne.s32.totalorder %s166, %s180
      %p182 = scmp.eq.s32.totalorder %s30, 0
      %p183 = por %p181, %p182
      %s185 = sadd.s32 %s184, 1
      %p188 = scmp.eq.s32.totalorder %s24, 1
      %p189 = scmp.ne.s32.totalorder %s184, %s186
      %p190 = scmp.eq.s32.totalorder %s24, 0
      %p191 = por %p189, %p190
      %p192 = scmp.ne.s32.totalorder %s184, %s186
      %p193 = scmp.eq.s32.totalorder %s29, 1
      %p194 = por %p192, %p193
      %p195 = scmp.ne.s32.totalorder %s186, %s187
      %p196 = scmp.eq.s32.totalorder %s29, 0
      %p197 = por %p195, %p196
      %p198 = scmp.ne.s32.totalorder %s186, %s187
      %p199 = scmp.eq.s32.totalorder %s30, 1
      %p200 = por %p198, %p199
      %p202 = scmp.ne.s32.totalorder %s187, %s201
      %p203 = scmp.eq.s32.totalorder %s30, 0
      %p204 = por %p202, %p203
      %s206 = sadd.s32 %s205, 1
      %p209 = scmp.eq.s32.totalorder %s24, 1
      %p210 = scmp.ne.s32.totalorder %s205, %s207
      %p211 = scmp.eq.s32.totalorder %s24, 0
      %p212 = por %p210, %p211
      %p213 = scmp.ne.s32.totalorder %s205, %s207
      %p214 = scmp.eq.s32.totalorder %s29, 1
      %p215 = por %p213, %p214
      %p216 = scmp.ne.s32.totalorder %s207, %s208
      %p217 = scmp.eq.s32.totalorder %s29, 0
      %p218 = por %p216, %p217
      %p219 = scmp.ne.s32.totalorder %s207, %s208
      %p220 = scmp.eq.s32.totalorder %s30, 1
      %p221 = por %p219, %p220
      %p223 = scmp.ne.s32.totalorder %s208, %s222
      %p224 = scmp.eq.s32.totalorder %s30, 0
      %p225 = por %p223, %p224
      %s227 = sadd.s32 %s226, 1
      %p230 = scmp.eq.s32.totalorder %s24, 1
      %p231 = scmp.ne.s32.totalorder %s226, %s228
      %p232 = scmp.eq.s32.totalorder %s24, 0
      %p233 = por %p231, %p232
      %p234 = scmp.ne.s32.totalorder %s226, %s228
      %p235 = scmp.eq.s32.totalorder %s29, 1
      %p236 = por %p234, %p235
      %p237 = scmp.ne.s32.totalorder %s228, %s229
      %p238 = scmp.eq.s32.totalorder %s29, 0
      %p239 = por %p237, %p238
      %p240 = scmp.ne.s32.totalorder %s228, %s229
      %p241 = scmp.eq.s32.totalorder %s30, 1
      %p242 = por %p240, %p241
      %p244 = scmp.ne.s32.totalorder %s229, %s243
      %p245 = scmp.eq.s32.totalorder %s30, 0
      %p246 = por %p244, %p245
      %s248 = sadd.s32 %s247, 1
      %p251 = scmp.eq.s32.totalorder %s24, 1
      %p252 = scmp.ne.s32.totalorder %s247, %s249
      %p253 = scmp.eq.s32.totalorder %s24, 0
      %p254 = por %p252, %p253
      %p255 = scmp.ne.s32.totalorder %s247, %s249
      %p256 = scmp.eq.s32.totalorder %s29, 1
      %p257 = por %p255, %p256
      %p258 = scmp.ne.s32.totalorder %s249, %s250
      %p259 = scmp.eq.s32.totalorder %s29, 0
      %p260 = por %p258, %p259
      %p261 = scmp.ne.s32.totalorder %s249, %s250
      %p262 = scmp.eq.s32.totalorder %s30, 1
      %p263 = por %p261, %p262
      %p265 = scmp.ne.s32.totalorder %s250, %s264
      %p266 = scmp.eq.s32.totalorder %s30, 0
      %p267 = por %p265, %p266
      %s269 = sadd.s32 %s268, 1
      %p272 = scmp.eq.s32.totalorder %s24, 1
      %p273 = scmp.ne.s32.totalorder %s268, %s270
      %p274 = scmp.eq.s32.totalorder %s24, 0
      %p275 = por %p273, %p274
      %p276 = scmp.ne.s32.totalorder %s268, %s270
      %p277 = scmp.eq.s32.totalorder %s29, 1
      %p278 = por %p276, %p277
      %p279 = scmp.ne.s32.totalorder %s270, %s271
      %p280 = scmp.eq.s32.totalorder %s29, 0
      %p281 = por %p279, %p280
      %p282 = scmp.ne.s32.totalorder %s270, %s271
      %p283 = scmp.eq.s32.totalorder %s30, 1
      %p284 = por %p282, %p283
      %p286 = scmp.ne.s32.totalorder %s271, %s285
      %p287 = scmp.eq.s32.totalorder %s30, 0
      %p288 = por %p286, %p287
      %s289 = ssub.s32 %s24, %s31
      %p290 = scmp.eq.s32.totalorder %s289, 0
      %s292 = sadd.s32 %s291, 1
      %s293 = scalar_select %p290, %s291, %s292
      %p296 = pneg %p290
      %p297 = scmp.eq.s32.totalorder %s24, 1
      %p298 = por %p296, %p297
      %p299 = scmp.ne.s32.totalorder %s291, %s294
      %p300 = scmp.eq.s32.totalorder %s24, 0
      %p301 = por %p299, %p300
      %p302 = scmp.ne.s32.totalorder %s291, %s294
      %p303 = scmp.eq.s32.totalorder %s29, 1
      %p304 = por %p302, %p303
      %p305 = scmp.ne.s32.totalorder %s294, %s295
      %p306 = scmp.eq.s32.totalorder %s29, 0
      %p307 = por %p305, %p306
      %p308 = scmp.ne.s32.totalorder %s294, %s295
      %p309 = scmp.eq.s32.totalorder %s30, 1
      %p310 = por %p308, %p309
      %p312 = scmp.ne.s32.totalorder %s295, %s311
      %p313 = scmp.eq.s32.totalorder %s30, 0
      %p314 = por %p312, %p313
      %p315 = scmp.le.s32.totalorder 1, %s24
      %p316 = scmp.lt.s32.totalorder %s24, 3
      %p317 = pnand %p315, %p316
      %p318 = pneg %p317
      // Predicated region
      $region9: #{tpu_custom_call.1} parent=5 // pred_check
        _
      $region10: #{tpu_custom_call.1} parent=5 // pred_check_branch
        %320 = sbr.rel (%p317) target = $region12
      $region11: #{tpu_custom_call.1} parent=5 // pred_region
        %s321 = ssub.s32 %s24, 1
        // Predicated region
        $region13: #{tpu_custom_call.1} parent=11 // pred_check
          %p322 = pneg %p71
        $region14: #{tpu_custom_call.1} parent=11 // pred_check_branch
          %324 = sbr.rel (%p322) target = $region16
        $region15: #{tpu_custom_call.1} parent=11 // pred_region
          _
        $region16: #{tpu_custom_call.1} parent=11 // pred_fallthru
          _
        // Predicated region
        $region17: #{tpu_custom_call.1} parent=11 // pred_check
          %p325 = pneg %p92
        $region18: #{tpu_custom_call.1} parent=11 // pred_check_branch
          %327 = sbr.rel (%p325) target = $region20
        $region19: #{tpu_custom_call.1} parent=11 // pred_region
          _
        $region20: #{tpu_custom_call.1} parent=11 // pred_fallthru
          _
        // Predicated region
        $region21: #{tpu_custom_call.1} parent=11 // pred_check
          %p328 = pneg %p113
        $region22: #{tpu_custom_call.1} parent=11 // pred_check_branch
          %330 = sbr.rel (%p328) target = $region24
        $region23: #{tpu_custom_call.1} parent=11 // pred_region
          _
        $region24: #{tpu_custom_call.1} parent=11 // pred_fallthru
          _
        // Predicated region
        $region25: #{tpu_custom_call.1} parent=11 // pred_check
          %p331 = pneg %p134
        $region26: #{tpu_custom_call.1} parent=11 // pred_check_branch
          %333 = sbr.rel (%p331) target = $region28
        $region27: #{tpu_custom_call.1} parent=11 // pred_region
          %s335 = ssub.s32 256, 256
          %336 = vsyncadd [#allocation3], %s335
          %s337 = sshll.u32 [#allocation2], 4
          %s338 = int_to_ptr.vmem [resolvable:$true] %s337
          %343 = dma.hbm_to_vmem [thread:$0]  %s4, 256, %s338, [#allocation3], 64, 64, 4
        $region28: #{tpu_custom_call.1} parent=11 // pred_fallthru
          _
        // Predicated region
        $region29: #{tpu_custom_call.1} parent=11 // pred_check
          %p344 = pneg %p155
        $region30: #{tpu_custom_call.1} parent=11 // pred_check_branch
          %346 = sbr.rel (%p344) target = $region32
        $region31: #{tpu_custom_call.1} parent=11 // pred_region
          %s348 = ssub.s32 256, 256
          %349 = vsyncadd [#allocation6], %s348
          %s350 = sshll.u32 [#allocation5], 4
          %s351 = int_to_ptr.vmem [resolvable:$true] %s350
          %356 = dma.hbm_to_vmem [thread:$0]  %s5, 256, %s351, [#allocation6], 64, 64, 4
        $region32: #{tpu_custom_call.1} parent=11 // pred_fallthru
          _
        // Predicated region
        $region33: #{tpu_custom_call.1} parent=11 // pred_check
          %p357 = pneg %p176
        $region34: #{tpu_custom_call.1} parent=11 // pred_check_branch
          %359 = sbr.rel (%p357) target = $region36
        $region35: #{tpu_custom_call.1} parent=11 // pred_region
          _
        $region36: #{tpu_custom_call.1} parent=11 // pred_fallthru
          _
        // Predicated region
        $region37: #{tpu_custom_call.1} parent=11 // pred_check
          %p360 = pneg %p197
        $region38: #{tpu_custom_call.1} parent=11 // pred_check_branch
          %362 = sbr.rel (%p360) target = $region40
        $region39: #{tpu_custom_call.1} parent=11 // pred_region
          %s364 = ssub.s32 256, 256
          %365 = vsyncadd [#allocation6], %s364
          %s366 = sshll.u32 [#allocation7], 4
          %s367 = int_to_ptr.vmem [resolvable:$true] %s366
          %372 = dma.hbm_to_vmem [thread:$0]  %s7, 256, %s367, [#allocation6], 64, 64, 4
        $region40: #{tpu_custom_call.1} parent=11 // pred_fallthru
          _
        // Predicated region
        $region41: #{tpu_custom_call.1} parent=11 // pred_check
          %p373 = pneg %p218
        $region42: #{tpu_custom_call.1} parent=11 // pred_check_branch
          %375 = sbr.rel (%p373) target = $region44
        $region43: #{tpu_custom_call.1} parent=11 // pred_region
          %s377 = ssub.s32 256, 256
          %378 = vsyncadd [#allocation9], %s377
          %s379 = sshll.u32 [#allocation8], 4
          %s380 = int_to_ptr.vmem [resolvable:$true] %s379
          %385 = dma.hbm_to_vmem [thread:$0]  %s8, 256, %s380, [#allocation9], 64, 64, 4
        $region44: #{tpu_custom_call.1} parent=11 // pred_fallthru
          _
        // Predicated region
        $region45: #{tpu_custom_call.1} parent=11 // pred_check
          %p386 = pneg %p239
        $region46: #{tpu_custom_call.1} parent=11 // pred_check_branch
          %388 = sbr.rel (%p386) target = $region48
        $region47: #{tpu_custom_call.1} parent=11 // pred_region
          _
        $region48: #{tpu_custom_call.1} parent=11 // pred_fallthru
          _
        // Predicated region
        $region49: #{tpu_custom_call.1} parent=11 // pred_check
          %p389 = pneg %p260
        $region50: #{tpu_custom_call.1} parent=11 // pred_check_branch
          %391 = sbr.rel (%p389) target = $region52
        $region51: #{tpu_custom_call.1} parent=11 // pred_region
          _
        $region52: #{tpu_custom_call.1} parent=11 // pred_fallthru
          _
        // Predicated region
        $region53: #{tpu_custom_call.1} parent=11 // pred_check
          %p392 = pneg %p281
        $region54: #{tpu_custom_call.1} parent=11 // pred_check_branch
          %394 = sbr.rel (%p392) target = $region56
        $region55: #{tpu_custom_call.1} parent=11 // pred_region
          _
        $region56: #{tpu_custom_call.1} parent=11 // pred_fallthru
          _
      $region12: #{tpu_custom_call.1} parent=5 // pred_fallthru
        _
      %p395 = scmp.lt.s32.totalorder %s24, 2
      // Predicated region
      $region57: #{tpu_custom_call.1} parent=5 // pred_check
        %p396 = pneg %p395
      $region58: #{tpu_custom_call.1} parent=5 // pred_check_branch
        %398 = sbr.rel (%p396) target = $region60
      $region59: #{tpu_custom_call.1} parent=5 // pred_region
        // Predicated region
        $region61: #{tpu_custom_call.1} parent=59 // pred_check
          %p399 = pneg %p44
        $region62: #{tpu_custom_call.1} parent=59 // pred_check_branch
          %401 = sbr.rel (%p399) target = $region64
        $region63: #{tpu_custom_call.1} parent=59 // pred_region
          %p402 = scmp.lt.s32.totalorder %s24, 1
          %s403 = scalar_select %p402, %s24, 1
          %s404 = smul.addr %s403, 8
          %s405 = scalar_lea.vmem %s0, %s404
        $region64: #{tpu_custom_call.1} parent=59 // pred_fallthru
          _
      $region60: #{tpu_custom_call.1} parent=5 // pred_fallthru
        _
      %p406 = scmp.le.s32.totalorder 1, %s24
      %p407 = scmp.lt.s32.totalorder %s24, 3
      %p408 = pnand %p406, %p407
      %p409 = pneg %p408
      // Predicated region
      $region65: #{tpu_custom_call.1} parent=5 // pred_check
        _
      $region66: #{tpu_custom_call.1} parent=5 // pred_check_branch
        %411 = sbr.rel (%p408) target = $region68
      $region67: #{tpu_custom_call.1} parent=5 // pred_region
        %s412 = ssub.s32 %s24, 1
        // Predicated region
        $region69: #{tpu_custom_call.1} parent=67 // pred_check
          %p413 = pneg %p134
        $region70: #{tpu_custom_call.1} parent=67 // pred_check_branch
          %415 = sbr.rel (%p413) target = $region72
        $region71: #{tpu_custom_call.1} parent=67 // pred_region
          %416 = dma.done [#allocation3], 256
        $region72: #{tpu_custom_call.1} parent=67 // pred_fallthru
          _
        // Predicated region
        $region73: #{tpu_custom_call.1} parent=67 // pred_check
          %p417 = pneg %p155
        $region74: #{tpu_custom_call.1} parent=67 // pred_check_branch
          %419 = sbr.rel (%p417) target = $region76
        $region75: #{tpu_custom_call.1} parent=67 // pred_region
          %420 = dma.done [#allocation6], 256
        $region76: #{tpu_custom_call.1} parent=67 // pred_fallthru
          _
        // Predicated region
        $region77: #{tpu_custom_call.1} parent=67 // pred_check
          %p421 = pneg %p197
        $region78: #{tpu_custom_call.1} parent=67 // pred_check_branch
          %423 = sbr.rel (%p421) target = $region80
        $region79: #{tpu_custom_call.1} parent=67 // pred_region
          %424 = dma.done [#allocation6], 256
        $region80: #{tpu_custom_call.1} parent=67 // pred_fallthru
          _
        // Predicated region
        $region81: #{tpu_custom_call.1} parent=67 // pred_check
          %p425 = pneg %p218
        $region82: #{tpu_custom_call.1} parent=67 // pred_check_branch
          %427 = sbr.rel (%p425) target = $region84
        $region83: #{tpu_custom_call.1} parent=67 // pred_region
          %428 = dma.done [#allocation9], 256
        $region84: #{tpu_custom_call.1} parent=67 // pred_fallthru
          _
        %p429 = scmp.lt.s32.totalorder %s29, 1
        %s430 = scalar_select %p429, %s29, 1
        %s431 = smul.addr %s430, 8
        %s432 = scalar_lea.vmem %s0, %s431
        %p433 = pneg %p50
        %p434 = pneg %p47
        %p435 = pneg %p71
        %p436 = pneg %p68
        %p437 = pneg %p92
        %p438 = pneg %p89
        %p439 = pneg %p113
        %p440 = pneg %p110
        %p441 = pneg %p134
        %p442 = pneg %p131
        %p443 = pneg %p155
        %p444 = pneg %p152
        %p445 = pneg %p176
        %p446 = pneg %p173
        %p447 = pneg %p197
        %p448 = pneg %p194
        %p449 = pneg %p218
        %p450 = pneg %p215
        %p451 = pneg %p239
        %p452 = pneg %p236
        %p453 = pneg %p260
        %p454 = pneg %p257
        %p455 = pneg %p281
        %p456 = pneg %p278
        %p457 = pneg %p307
        %p458 = pneg %p304
        %s459 = sand.u32 %s294, 1
        %s460 = scalar_lea.sflag [#allocation4], %s459
        %s461 = sand.u32 %s294, 1
        %s462 = smul.addr %s461, 8
        %s463 = scalar_lea.vmem [#allocation10], %s462
        %p464 = scmp.lt.s32.totalorder %s29, 1
        %s465 = scalar_select %p464, %s29, 1
        %s466 = smul.addr %s465, 8
        %s467 = scalar_lea.vmem %s0, %s466
        %v469 = vld [vmem:[%s467] sm:$0xff]
        %v470 = vld [vmem:[%s1] sm:$0x1]
        %v471 = vmul.f32 %v469, %v469
        %vm472 = vcmask 261120
        %v473 = vsel %vm472, %v471, 0.0
        %474 = vadd.xlane.f32.xlu0 %v473
        %v475 = vpop.xlane.xlu0 %474
        %v476 = vrcp.pop 32.0
        %v477 = vmul.f32 %v475, %v476
        %v478 = vadd.f32 %v477, 1e-06
        %v479 = vrsqrt.pop %v478
        %v480 = vmul.f32 %v469, %v479
        %v482 = vlaneseq
        %v483 = vshrl.u32 %v482, 7
        %v484 = vsub.s32 0, %v483
        %v485 = vrot.slane %v470, %v484
        %v487 = vmul.f32 %v480, %v485
        %v488 = vld [vmem:[%s2] sm:$0xf]
        %v489 = vld [vmem:[%s2 + $0x4] sm:$0xf]
        %v490 = vld [vmem:[%s2 + $0x8] sm:$0xf]
        %v491 = vld [vmem:[%s2 + $0xc] sm:$0xf]
        %v492 = vpack.c.bf16 %v487, %v487
        %v497 = vunpack.c.l.b16 %v488
        %v498 = vunpack.c.l.b16 %v489
        %v499 = vunpack.c.l.b16 %v490
        %v500 = vunpack.c.l.b16 %v491
        %v501 = vpack.c.b16 %v498, %v497
        %v502 = vpack.c.b16 %v500, %v499
        %v506 = vsel %vm472, %v492, 0
        %508 = vmatprep.subr.bf16.mxu0 0
        %509 = vmatpush1.bf16.msra.mxu0 %v501
        %510 = vmatprep.subr.bf16.mxu0 0
        %511 = vmatpush1.bf16.msra.mxu0 %v502
        %512 = vmatprep.subr.bf16.mxu0 0
        %513 = vmatpush1.bf16.msra.mxu0 0
        %514 = vmatprep.subr.bf16.mxu0 0
        %515 = vmatpush1.bf16.msra.mxu0 0
        %516 = vmatprep.subr.bf16.mxu0 0
        %517 = vmatpush1.bf16.msra.mxu0 0
        %518 = vmatprep.subr.bf16.mxu0 0
        %519 = vmatpush1.bf16.msra.mxu0 0
        %520 = vmatprep.subr.bf16.mxu0 0
        %521 = vmatpush1.bf16.msra.mxu0 0
        %522 = vmatprep.subr.bf16.mxu0 0
        %523 = vmatpush1.bf16.msra.mxu0 0
        %524 = vmatprep.subr.bf16.mxu0 0
        %525 = vmatpush1.bf16.msra.mxu0 0
        %526 = vmatprep.subr.bf16.mxu0 0
        %527 = vmatpush1.bf16.msra.mxu0 0
        %528 = vmatprep.subr.bf16.mxu0 0
        %529 = vmatpush1.bf16.msra.mxu0 0
        %530 = vmatprep.subr.bf16.mxu0 0
        %531 = vmatpush1.bf16.msra.mxu0 0
        %532 = vmatprep.subr.bf16.mxu0 0
        %533 = vmatpush1.bf16.msra.mxu0 0
        %534 = vmatprep.subr.bf16.mxu0 0
        %535 = vmatpush1.bf16.msra.mxu0 0
        %536 = vmatprep.subr.bf16.mxu0 0
        %537 = vmatpush1.bf16.msra.mxu0 0
        %538 = vmatprep.subr.bf16.mxu0 0
        %539 = vmatpush1.bf16.msra.mxu0 0
        %540 = vmatprep.mubr.bf16.mxu0 0
        %541 = vmatmul.mubr.bf16.gmra.mrb[0].mxu0 %v506
        %v542 = vpop.f32.mrb[0].mxu0
        %v543 = vadd.f32 0.0, %v542
        %v544 = vpop.f32.mrb[0].mxu0
        %v545 = vpop.f32.mrb[0].mxu0
        %v546 = vpop.f32.mrb[0].mxu0
        %547 = vdwg.mxu0
        %v548 = vld [vmem:[%s3] sm:$0xf]
        %v549 = vld [vmem:[%s3 + $0x4] sm:$0xf]
        %v550 = vld [vmem:[%s3 + $0x8] sm:$0xf]
        %v551 = vld [vmem:[%s3 + $0xc] sm:$0xf]
        %v556 = vunpack.c.l.b16 %v548
        %v557 = vunpack.c.l.b16 %v549
        %v558 = vunpack.c.l.b16 %v550
        %v559 = vunpack.c.l.b16 %v551
        %v560 = vpack.c.b16 %v557, %v556
        %v561 = vpack.c.b16 %v559, %v558
        %564 = vmatprep.subr.bf16.mxu0 0
        %565 = vmatpush1.bf16.msra.mxu0 %v560
        %566 = vmatprep.subr.bf16.mxu0 0
        %567 = vmatpush1.bf16.msra.mxu0 %v561
        %568 = vmatprep.subr.bf16.mxu0 0
        %569 = vmatpush1.bf16.msra.mxu0 0
        %570 = vmatprep.subr.bf16.mxu0 0
        %571 = vmatpush1.bf16.msra.mxu0 0
        %572 = vmatprep.subr.bf16.mxu0 0
        %573 = vmatpush1.bf16.msra.mxu0 0
        %574 = vmatprep.subr.bf16.mxu0 0
        %575 = vmatpush1.bf16.msra.mxu0 0
        %576 = vmatprep.subr.bf16.mxu0 0
        %577 = vmatpush1.bf16.msra.mxu0 0
        %578 = vmatprep.subr.bf16.mxu0 0
        %579 = vmatpush1.bf16.msra.mxu0 0
        %580 = vmatprep.subr.bf16.mxu0 0
        %581 = vmatpush1.bf16.msra.mxu0 0
        %582 = vmatprep.subr.bf16.mxu0 0
        %583 = vmatpush1.bf16.msra.mxu0 0
        %584 = vmatprep.subr.bf16.mxu0 0
        %585 = vmatpush1.bf16.msra.mxu0 0
        %586 = vmatprep.subr.bf16.mxu0 0
        %587 = vmatpush1.bf16.msra.mxu0 0
        %588 = vmatprep.subr.bf16.mxu0 0
        %589 = vmatpush1.bf16.msra.mxu0 0
        %590 = vmatprep.subr.bf16.mxu0 0
        %591 = vmatpush1.bf16.msra.mxu0 0
        %592 = vmatprep.subr.bf16.mxu0 0
        %593 = vmatpush1.bf16.msra.mxu0 0
        %594 = vmatprep.subr.bf16.mxu0 0
        %595 = vmatpush1.bf16.msra.mxu0 0
        %596 = vmatprep.mubr.bf16.mxu0 0
        %597 = vmatmul.mubr.bf16.gmra.mrb[0].mxu0 %v506
        %v598 = vpop.f32.mrb[0].mxu0
        %v599 = vadd.f32 0.0, %v598
        %v600 = vpop.f32.mrb[0].mxu0
        %v601 = vpop.f32.mrb[0].mxu0
        %v602 = vpop.f32.mrb[0].mxu0
        %603 = vdwg.mxu0
        %v604 = vld [vmem:[#allocation2] sm:$0xf]
        %v605 = vld [vmem:[#allocation2 + $0x4] sm:$0xf]
        %v606 = vld [vmem:[#allocation2 + $0x8] sm:$0xf]
        %v607 = vld [vmem:[#allocation2 + $0xc] sm:$0xf]
        %v612 = vunpack.c.l.b16 %v604
        %v613 = vunpack.c.l.b16 %v605
        %v614 = vunpack.c.l.b16 %v606
        %v615 = vunpack.c.l.b16 %v607
        %v616 = vpack.c.b16 %v613, %v612
        %v617 = vpack.c.b16 %v615, %v614
        %620 = vmatprep.subr.bf16.mxu0 0
        %621 = vmatpush1.bf16.msra.mxu0 %v616
        %622 = vmatprep.subr.bf16.mxu0 0
        %623 = vmatpush1.bf16.msra.mxu0 %v617
        %624 = vmatprep.subr.bf16.mxu0 0
        %625 = vmatpush1.bf16.msra.mxu0 0
        %626 = vmatprep.subr.bf16.mxu0 0
        %627 = vmatpush1.bf16.msra.mxu0 0
        %628 = vmatprep.subr.bf16.mxu0 0
        %629 = vmatpush1.bf16.msra.mxu0 0
        %630 = vmatprep.subr.bf16.mxu0 0
        %631 = vmatpush1.bf16.msra.mxu0 0
        %632 = vmatprep.subr.bf16.mxu0 0
        %633 = vmatpush1.bf16.msra.mxu0 0
        %634 = vmatprep.subr.bf16.mxu0 0
        %635 = vmatpush1.bf16.msra.mxu0 0
        %636 = vmatprep.subr.bf16.mxu0 0
        %637 = vmatpush1.bf16.msra.mxu0 0
        %638 = vmatprep.subr.bf16.mxu0 0
        %639 = vmatpush1.bf16.msra.mxu0 0
        %640 = vmatprep.subr.bf16.mxu0 0
        %641 = vmatpush1.bf16.msra.mxu0 0
        %642 = vmatprep.subr.bf16.mxu0 0
        %643 = vmatpush1.bf16.msra.mxu0 0
        %644 = vmatprep.subr.bf16.mxu0 0
        %645 = vmatpush1.bf16.msra.mxu0 0
        %646 = vmatprep.subr.bf16.mxu0 0
        %647 = vmatpush1.bf16.msra.mxu0 0
        %648 = vmatprep.subr.bf16.mxu0 0
        %649 = vmatpush1.bf16.msra.mxu0 0
        %650 = vmatprep.subr.bf16.mxu0 0
        %651 = vmatpush1.bf16.msra.mxu0 0
        %652 = vmatprep.mubr.bf16.mxu0 0
        %653 = vmatmul.mubr.bf16.gmra.mrb[0].mxu0 %v506
        %v654 = vpop.f32.mrb[0].mxu0
        %v655 = vadd.f32 0.0, %v654
        %v656 = vpop.f32.mrb[0].mxu0
        %v657 = vpop.f32.mrb[0].mxu0
        %v658 = vpop.f32.mrb[0].mxu0
        %659 = vdwg.mxu0
        %661 = vrot.lane.b32.xlu0 %v543, 120
        %v662 = vpop.permute.xlu0 %661
        %664 = vrot.lane.b32.xlu0 %v543, 112
        %v665 = vpop.permute.xlu0 %664
        %667 = vrot.lane.b32.xlu0 %v543, 104
        %v668 = vpop.permute.xlu0 %667
        %v670 = vcombine.low %v543, %v665
        %v671 = vcombine.high %v543, %v665
        %v673 = vunpack.c.l.s4 1983009808
        %v674 = vunpack.c.0.s8 %v673
        %v675 = vlaneseq
        %v676 = vshrl.u32 %v675, 7
        %v677 = vsub.s32 %v674, %v676
        %v678 = vrot.slane %v670, %v677
        %v680 = vunpack.c.l.s4 1983009808
        %v681 = vunpack.c.0.s8 %v680
        %v682 = vlaneseq
        %v683 = vshrl.u32 %v682, 7
        %v684 = vsub.s32 %v681, %v683
        %v685 = vrot.slane %v671, %v684
        %v686 = vcombine.low %v662, %v668
        %v687 = vcombine.high %v662, %v668
        %v689 = vunpack.c.l.s4 1983009808
        %v690 = vunpack.c.0.s8 %v689
        %v691 = vlaneseq
        %v692 = vshrl.u32 %v691, 7
        %v693 = vsub.s32 %v690, %v692
        %v694 = vrot.slane %v686, %v693
        %v696 = vunpack.c.l.s4 1983009808
        %v697 = vunpack.c.0.s8 %v696
        %v698 = vlaneseq
        %v699 = vshrl.u32 %v698, 7
        %v700 = vsub.s32 %v697, %v699
        %v701 = vrot.slane %v687, %v700
        %v702 = vcombine.low %v678, %v694
        %v703 = vcombine.high %v678, %v694
        %v705 = vunpack.c.l.s4 1934713408
        %v706 = vunpack.c.0.s8 %v705
        %v707 = vlaneseq
        %v708 = vshrl.u32 %v707, 7
        %v709 = vsub.s32 %v706, %v708
        %v710 = vrot.slane %v702, %v709
        %v712 = vunpack.c.l.s4 1934713408
        %v713 = vunpack.c.0.s8 %v712
        %v714 = vlaneseq
        %v715 = vshrl.u32 %v714, 7
        %v716 = vsub.s32 %v713, %v715
        %v717 = vrot.slane %v703, %v716
        %v718 = vcombine.low %v685, %v701
        %v719 = vcombine.high %v685, %v701
        %v721 = vunpack.c.l.s4 1934713408
        %v722 = vunpack.c.0.s8 %v721
        %v723 = vlaneseq
        %v724 = vshrl.u32 %v723, 7
        %v725 = vsub.s32 %v722, %v724
        %v726 = vrot.slane %v718, %v725
        %v728 = vunpack.c.l.s4 1934713408
        %v729 = vunpack.c.0.s8 %v728
        %v730 = vlaneseq
        %v731 = vshrl.u32 %v730, 7
        %v732 = vsub.s32 %v729, %v731
        %v733 = vrot.slane %v719, %v732
        %v734 = vcombine.high %v710, 0.0
        %v735 = vcombine.high %v717, 0.0
        %v736 = vcombine.high %v726, 0.0
        %v737 = vcombine.high %v733, 0.0
        %v738 = vcombine.low %v710, %v717
        %v740 = vunpack.c.l.s4 1983009808
        %v741 = vunpack.c.0.s8 %v740
        %v742 = vlaneseq
        %v743 = vshrl.u32 %v742, 7
        %v744 = vsub.s32 %v741, %v743
        %v745 = vrot.slane %v738, %v744
        %v746 = vcombine.low %v734, %v735
        %v748 = vunpack.c.l.s4 1983009808
        %v749 = vunpack.c.0.s8 %v748
        %v750 = vlaneseq
        %v751 = vshrl.u32 %v750, 7
        %v752 = vsub.s32 %v749, %v751
        %v753 = vrot.slane %v746, %v752
        %v754 = vcombine.low %v726, %v733
        %v756 = vunpack.c.l.s4 1983009808
        %v757 = vunpack.c.0.s8 %v756
        %v758 = vlaneseq
        %v759 = vshrl.u32 %v758, 7
        %v760 = vsub.s32 %v757, %v759
        %v761 = vrot.slane %v754, %v760
        %v762 = vcombine.low %v736, %v737
        %v764 = vunpack.c.l.s4 1983009808
        %v765 = vunpack.c.0.s8 %v764
        %v766 = vlaneseq
        %v767 = vshrl.u32 %v766, 7
        %v768 = vsub.s32 %v765, %v767
        %v769 = vrot.slane %v762, %v768
        %v770 = vcombine.low %v745, %v753
        %v771 = vcombine.high %v745, %v753
        %v773 = vunpack.c.l.s4 1934713408
        %v774 = vunpack.c.0.s8 %v773
        %v775 = vlaneseq
        %v776 = vshrl.u32 %v775, 7
        %v777 = vsub.s32 %v774, %v776
        %v778 = vrot.slane %v770, %v777
        %v780 = vunpack.c.l.s4 1934713408
        %v781 = vunpack.c.0.s8 %v780
        %v782 = vlaneseq
        %v783 = vshrl.u32 %v782, 7
        %v784 = vsub.s32 %v781, %v783
        %v785 = vrot.slane %v771, %v784
        %v786 = vcombine.low %v761, %v769
        %v787 = vcombine.high %v761, %v769
        %v789 = vunpack.c.l.s4 1934713408
        %v790 = vunpack.c.0.s8 %v789
        %v791 = vlaneseq
        %v792 = vshrl.u32 %v791, 7
        %v793 = vsub.s32 %v790, %v792
        %v794 = vrot.slane %v786, %v793
        %v796 = vunpack.c.l.s4 1934713408
        %v797 = vunpack.c.0.s8 %v796
        %v798 = vlaneseq
        %v799 = vshrl.u32 %v798, 7
        %v800 = vsub.s32 %v797, %v799
        %v801 = vrot.slane %v787, %v800
        %v802 = vcombine.low %v778, %v794
        %v803 = vcombine.high %v778, %v794
        %v804 = vcombine.low %v785, %v801
        %v805 = vcombine.high %v785, %v801
        %807 = vrot.lane.b32.xlu0 %v599, 120
        %v808 = vpop.permute.xlu0 %807
        %810 = vrot.lane.b32.xlu0 %v599, 112
        %v811 = vpop.permute.xlu0 %810
        %813 = vrot.lane.b32.xlu0 %v599, 104
        %v814 = vpop.permute.xlu0 %813
        %v816 = vcombine.low %v599, %v811
        %v817 = vcombine.high %v599, %v811
        %v819 = vunpack.c.l.s4 1983009808
        %v820 = vunpack.c.0.s8 %v819
        %v821 = vlaneseq
        %v822 = vshrl.u32 %v821, 7
        %v823 = vsub.s32 %v820, %v822
        %v824 = vrot.slane %v816, %v823
        %v826 = vunpack.c.l.s4 1983009808
        %v827 = vunpack.c.0.s8 %v826
        %v828 = vlaneseq
        %v829 = vshrl.u32 %v828, 7
        %v830 = vsub.s32 %v827, %v829
        %v831 = vrot.slane %v817, %v830
        %v832 = vcombine.low %v808, %v814
        %v833 = vcombine.high %v808, %v814
        %v835 = vunpack.c.l.s4 1983009808
        %v836 = vunpack.c.0.s8 %v835
        %v837 = vlaneseq
        %v838 = vshrl.u32 %v837, 7
        %v839 = vsub.s32 %v836, %v838
        %v840 = vrot.slane %v832, %v839
        %v842 = vunpack.c.l.s4 1983009808
        %v843 = vunpack.c.0.s8 %v842
        %v844 = vlaneseq
        %v845 = vshrl.u32 %v844, 7
        %v846 = vsub.s32 %v843, %v845
        %v847 = vrot.slane %v833, %v846
        %v848 = vcombine.low %v824, %v840
        %v849 = vcombine.high %v824, %v840
        %v851 = vunpack.c.l.s4 1934713408
        %v852 = vunpack.c.0.s8 %v851
        %v853 = vlaneseq
        %v854 = vshrl.u32 %v853, 7
        %v855 = vsub.s32 %v852, %v854
        %v856 = vrot.slane %v848, %v855
        %v858 = vunpack.c.l.s4 1934713408
        %v859 = vunpack.c.0.s8 %v858
        %v860 = vlaneseq
        %v861 = vshrl.u32 %v860, 7
        %v862 = vsub.s32 %v859, %v861
        %v863 = vrot.slane %v849, %v862
        %v864 = vcombine.low %v831, %v847
        %v865 = vcombine.high %v831, %v847
        %v867 = vunpack.c.l.s4 1934713408
        %v868 = vunpack.c.0.s8 %v867
        %v869 = vlaneseq
        %v870 = vshrl.u32 %v869, 7
        %v871 = vsub.s32 %v868, %v870
        %v872 = vrot.slane %v864, %v871
        %v874 = vunpack.c.l.s4 1934713408
        %v875 = vunpack.c.0.s8 %v874
        %v876 = vlaneseq
        %v877 = vshrl.u32 %v876, 7
        %v878 = vsub.s32 %v875, %v877
        %v879 = vrot.slane %v865, %v878
        %v880 = vcombine.high %v856, 0.0
        %v881 = vcombine.high %v863, 0.0
        %v882 = vcombine.high %v872, 0.0
        %v883 = vcombine.high %v879, 0.0
        %v884 = vcombine.low %v856, %v863
        %v886 = vunpack.c.l.s4 1983009808
        %v887 = vunpack.c.0.s8 %v886
        %v888 = vlaneseq
        %v889 = vshrl.u32 %v888, 7
        %v890 = vsub.s32 %v887, %v889
        %v891 = vrot.slane %v884, %v890
        %v892 = vcombine.low %v880, %v881
        %v894 = vunpack.c.l.s4 1983009808
        %v895 = vunpack.c.0.s8 %v894
        %v896 = vlaneseq
        %v897 = vshrl.u32 %v896, 7
        %v898 = vsub.s32 %v895, %v897
        %v899 = vrot.slane %v892, %v898
        %v900 = vcombine.low %v872, %v879
        %v902 = vunpack.c.l.s4 1983009808
        %v903 = vunpack.c.0.s8 %v902
        %v904 = vlaneseq
        %v905 = vshrl.u32 %v904, 7
        %v906 = vsub.s32 %v903, %v905
        %v907 = vrot.slane %v900, %v906
        %v908 = vcombine.low %v882, %v883
        %v910 = vunpack.c.l.s4 1983009808
        %v911 = vunpack.c.0.s8 %v910
        %v912 = vlaneseq
        %v913 = vshrl.u32 %v912, 7
        %v914 = vsub.s32 %v911, %v913
        %v915 = vrot.slane %v908, %v914
        %v916 = vcombine.low %v891, %v899
        %v917 = vcombine.high %v891, %v899
        %v919 = vunpack.c.l.s4 1934713408
        %v920 = vunpack.c.0.s8 %v919
        %v921 = vlaneseq
        %v922 = vshrl.u32 %v921, 7
        %v923 = vsub.s32 %v920, %v922
        %v924 = vrot.slane %v916, %v923
        %v926 = vunpack.c.l.s4 1934713408
        %v927 = vunpack.c.0.s8 %v926
        %v928 = vlaneseq
        %v929 = vshrl.u32 %v928, 7
        %v930 = vsub.s32 %v927, %v929
        %v931 = vrot.slane %v917, %v930
        %v932 = vcombine.low %v907, %v915
        %v933 = vcombine.high %v907, %v915
        %v935 = vunpack.c.l.s4 1934713408
        %v936 = vunpack.c.0.s8 %v935
        %v937 = vlaneseq
        %v938 = vshrl.u32 %v937, 7
        %v939 = vsub.s32 %v936, %v938
        %v940 = vrot.slane %v932, %v939
        %v942 = vunpack.c.l.s4 1934713408
        %v943 = vunpack.c.0.s8 %v942
        %v944 = vlaneseq
        %v945 = vshrl.u32 %v944, 7
        %v946 = vsub.s32 %v943, %v945
        %v947 = vrot.slane %v933, %v946
        %v948 = vcombine.low %v924, %v940
        %v949 = vcombine.high %v924, %v940
        %v950 = vcombine.low %v931, %v947
        %v951 = vcombine.high %v931, %v947
        %953 = vrot.lane.b32.xlu0 %v655, 120
        %v954 = vpop.permute.xlu0 %953
        %956 = vrot.lane.b32.xlu0 %v655, 112
        %v957 = vpop.permute.xlu0 %956
        %959 = vrot.lane.b32.xlu0 %v655, 104
        %v960 = vpop.permute.xlu0 %959
        %v962 = vcombine.low %v655, %v957
        %v963 = vcombine.high %v655, %v957
        %v965 = vunpack.c.l.s4 1983009808
        %v966 = vunpack.c.0.s8 %v965
        %v967 = vlaneseq
        %v968 = vshrl.u32 %v967, 7
        %v969 = vsub.s32 %v966, %v968
        %v970 = vrot.slane %v962, %v969
        %v972 = vunpack.c.l.s4 1983009808
        %v973 = vunpack.c.0.s8 %v972
        %v974 = vlaneseq
        %v975 = vshrl.u32 %v974, 7
        %v976 = vsub.s32 %v973, %v975
        %v977 = vrot.slane %v963, %v976
        %v978 = vcombine.low %v954, %v960
        %v979 = vcombine.high %v954, %v960
        %v981 = vunpack.c.l.s4 1983009808
        %v982 = vunpack.c.0.s8 %v981
        %v983 = vlaneseq
        %v984 = vshrl.u32 %v983, 7
        %v985 = vsub.s32 %v982, %v984
        %v986 = vrot.slane %v978, %v985
        %v988 = vunpack.c.l.s4 1983009808
        %v989 = vunpack.c.0.s8 %v988
        %v990 = vlaneseq
        %v991 = vshrl.u32 %v990, 7
        %v992 = vsub.s32 %v989, %v991
        %v993 = vrot.slane %v979, %v992
        %v994 = vcombine.low %v970, %v986
        %v995 = vcombine.high %v970, %v986
        %v997 = vunpack.c.l.s4 1934713408
        %v998 = vunpack.c.0.s8 %v997
        %v999 = vlaneseq
        %v1000 = vshrl.u32 %v999, 7
        %v1001 = vsub.s32 %v998, %v1000
        %v1002 = vrot.slane %v994, %v1001
        %v1004 = vunpack.c.l.s4 1934713408
        %v1005 = vunpack.c.0.s8 %v1004
        %v1006 = vlaneseq
        %v1007 = vshrl.u32 %v1006, 7
        %v1008 = vsub.s32 %v1005, %v1007
        %v1009 = vrot.slane %v995, %v1008
        %v1010 = vcombine.low %v977, %v993
        %v1011 = vcombine.high %v977, %v993
        %v1013 = vunpack.c.l.s4 1934713408
        %v1014 = vunpack.c.0.s8 %v1013
        %v1015 = vlaneseq
        %v1016 = vshrl.u32 %v1015, 7
        %v1017 = vsub.s32 %v1014, %v1016
        %v1018 = vrot.slane %v1010, %v1017
        %v1020 = vunpack.c.l.s4 1934713408
        %v1021 = vunpack.c.0.s8 %v1020
        %v1022 = vlaneseq
        %v1023 = vshrl.u32 %v1022, 7
        %v1024 = vsub.s32 %v1021, %v1023
        %v1025 = vrot.slane %v1011, %v1024
        %v1026 = vcombine.high %v1002, 0.0
        %v1027 = vcombine.high %v1009, 0.0
        %v1028 = vcombine.high %v1018, 0.0
        %v1029 = vcombine.high %v1025, 0.0
        %v1030 = vcombine.low %v1002, %v1009
        %v1032 = vunpack.c.l.s4 1983009808
        %v1033 = vunpack.c.0.s8 %v1032
        %v1034 = vlaneseq
        %v1035 = vshrl.u32 %v1034, 7
        %v1036 = vsub.s32 %v1033, %v1035
        %v1037 = vrot.slane %v1030, %v1036
        %v1038 = vcombine.low %v1026, %v1027
        %v1040 = vunpack.c.l.s4 1983009808
        %v1041 = vunpack.c.0.s8 %v1040
        %v1042 = vlaneseq
        %v1043 = vshrl.u32 %v1042, 7
        %v1044 = vsub.s32 %v1041, %v1043
        %v1045 = vrot.slane %v1038, %v1044
        %v1046 = vcombine.low %v1018, %v1025
        %v1048 = vunpack.c.l.s4 1983009808
        %v1049 = vunpack.c.0.s8 %v1048
        %v1050 = vlaneseq
        %v1051 = vshrl.u32 %v1050, 7
        %v1052 = vsub.s32 %v1049, %v1051
        %v1053 = vrot.slane %v1046, %v1052
        %v1054 = vcombine.low %v1028, %v1029
        %v1056 = vunpack.c.l.s4 1983009808
        %v1057 = vunpack.c.0.s8 %v1056
        %v1058 = vlaneseq
        %v1059 = vshrl.u32 %v1058, 7
        %v1060 = vsub.s32 %v1057, %v1059
        %v1061 = vrot.slane %v1054, %v1060
        %v1062 = vcombine.low %v1037, %v1045
        %v1063 = vcombine.high %v1037, %v1045
        %v1065 = vunpack.c.l.s4 1934713408
        %v1066 = vunpack.c.0.s8 %v1065
        %v1067 = vlaneseq
        %v1068 = vshrl.u32 %v1067, 7
        %v1069 = vsub.s32 %v1066, %v1068
        %v1070 = vrot.slane %v1062, %v1069
        %v1072 = vunpack.c.l.s4 1934713408
        %v1073 = vunpack.c.0.s8 %v1072
        %v1074 = vlaneseq
        %v1075 = vshrl.u32 %v1074, 7
        %v1076 = vsub.s32 %v1073, %v1075
        %v1077 = vrot.slane %v1063, %v1076
        %v1078 = vcombine.low %v1053, %v1061
        %v1079 = vcombine.high %v1053, %v1061
        %v1081 = vunpack.c.l.s4 1934713408
        %v1082 = vunpack.c.0.s8 %v1081
        %v1083 = vlaneseq
        %v1084 = vshrl.u32 %v1083, 7
        %v1085 = vsub.s32 %v1082, %v1084
        %v1086 = vrot.slane %v1078, %v1085
        %v1088 = vunpack.c.l.s4 1934713408
        %v1089 = vunpack.c.0.s8 %v1088
        %v1090 = vlaneseq
        %v1091 = vshrl.u32 %v1090, 7
        %v1092 = vsub.s32 %v1089, %v1091
        %v1093 = vrot.slane %v1079, %v1092
        %v1094 = vcombine.low %v1070, %v1086
        %v1095 = vcombine.high %v1070, %v1086
        %v1096 = vcombine.low %v1077, %v1093
        %v1097 = vcombine.high %v1077, %v1093
        %v1098 = vld [vmem:[%s10] sm:$0xff]
        %v1099 = vld [vmem:[%s11] sm:$0xff]
        %v1100 = vsub.f32 0.0, %v802
        %v1101 = vsub.f32 0.0, %v803
        %v1102 = vsub.f32 0.0, %v804
        %v1103 = vsub.f32 0.0, %v805
        %1108 = vrot.lane.b32.xlu0 %v1100, 124
        %v1109 = vpop.permute.xlu0 %1108
        %1110 = vrot.lane.b32.xlu0 %v1101, 124
        %v1111 = vpop.permute.xlu0 %1110
        %1112 = vrot.lane.b32.xlu0 %v1102, 124
        %v1113 = vpop.permute.xlu0 %1112
        %1114 = vrot.lane.b32.xlu0 %v1103, 124
        %v1115 = vpop.permute.xlu0 %1114
        %1124 = vrot.lane.b32.xlu0 %v802, 4
        %v1125 = vpop.permute.xlu0 %1124
        %1126 = vrot.lane.b32.xlu0 %v803, 4
        %v1127 = vpop.permute.xlu0 %1126
        %1128 = vrot.lane.b32.xlu0 %v804, 4
        %v1129 = vpop.permute.xlu0 %1128
        %1130 = vrot.lane.b32.xlu0 %v805, 4
        %v1131 = vpop.permute.xlu0 %1130
        %vm1136 = vcmask 31744
        %v1137 = vsel %vm1136, %v1109, %v1125
        %v1138 = vsel %vm1136, %v1111, %v1127
        %v1139 = vsel %vm1136, %v1113, %v1129
        %v1140 = vsel %vm1136, %v1115, %v1131
        %v1141 = vmul.f32 %v802, %v1098
        %v1142 = vmul.f32 %v803, %v1098
        %v1143 = vmul.f32 %v804, %v1098
        %v1144 = vmul.f32 %v805, %v1098
        %v1145 = vmul.f32 %v1137, %v1099
        %v1146 = vmul.f32 %v1138, %v1099
        %v1147 = vmul.f32 %v1139, %v1099
        %v1148 = vmul.f32 %v1140, %v1099
        %v1149 = vadd.f32 %v1141, %v1145
        %v1150 = vadd.f32 %v1142, %v1146
        %v1151 = vadd.f32 %v1143, %v1147
        %v1152 = vadd.f32 %v1144, %v1148
        %v1153 = vmul.f32 %v1149, 0.35355338
        %v1154 = vmul.f32 %v1150, 0.35355338
        %v1155 = vmul.f32 %v1151, 0.35355338
        %v1156 = vmul.f32 %v1152, 0.35355338
        %v1157 = vpack.c.bf16 %v1153, %v1153
        %v1158 = vpack.c.bf16 %v1154, %v1154
        %v1159 = vpack.c.bf16 %v1155, %v1155
        %v1160 = vpack.c.bf16 %v1156, %v1156
        %v1161 = vsub.f32 0.0, %v948
        %v1162 = vsub.f32 0.0, %v949
        %v1163 = vsub.f32 0.0, %v950
        %v1164 = vsub.f32 0.0, %v951
        %1169 = vrot.lane.b32.xlu0 %v1161, 124
        %v1170 = vpop.permute.xlu0 %1169
        %1171 = vrot.lane.b32.xlu0 %v1162, 124
        %v1172 = vpop.permute.xlu0 %1171
        %1173 = vrot.lane.b32.xlu0 %v1163, 124
        %v1174 = vpop.permute.xlu0 %1173
        %1175 = vrot.lane.b32.xlu0 %v1164, 124
        %v1176 = vpop.permute.xlu0 %1175
        %1185 = vrot.lane.b32.xlu0 %v948, 4
        %v1186 = vpop.permute.xlu0 %1185
        %1187 = vrot.lane.b32.xlu0 %v949, 4
        %v1188 = vpop.permute.xlu0 %1187
        %1189 = vrot.lane.b32.xlu0 %v950, 4
        %v1190 = vpop.permute.xlu0 %1189
        %1191 = vrot.lane.b32.xlu0 %v951, 4
        %v1192 = vpop.permute.xlu0 %1191
        %v1197 = vsel %vm1136, %v1170, %v1186
        %v1198 = vsel %vm1136, %v1172, %v1188
        %v1199 = vsel %vm1136, %v1174, %v1190
        %v1200 = vsel %vm1136, %v1176, %v1192
        %v1201 = vmul.f32 %v948, %v1098
        %v1202 = vmul.f32 %v949, %v1098
        %v1203 = vmul.f32 %v950, %v1098
        %v1204 = vmul.f32 %v951, %v1098
        %v1205 = vmul.f32 %v1197, %v1099
        %v1206 = vmul.f32 %v1198, %v1099
        %v1207 = vmul.f32 %v1199, %v1099
        %v1208 = vmul.f32 %v1200, %v1099
        %v1209 = vadd.f32 %v1201, %v1205
        %v1210 = vadd.f32 %v1202, %v1206
        %v1211 = vadd.f32 %v1203, %v1207
        %v1212 = vadd.f32 %v1204, %v1208
        %v1213 = vpack.c.bf16 %v1209, %v1209
        %v1214 = vpack.c.bf16 %v1210, %v1210
        %v1215 = vpack.c.bf16 %v1211, %v1211
        %v1216 = vpack.c.bf16 %v1212, %v1212
        %v1217 = vpack.c.bf16 %v1094, %v1094
        %v1218 = vpack.c.bf16 %v1095, %v1095
        %v1219 = vpack.c.bf16 %v1096, %v1096
        %v1220 = vpack.c.bf16 %v1097, %v1097
        %vm1221 = vcmask 64512
        %v1223 = vsel %vm1221, %v1157, 0
        %v1226 = vsel %vm1221, %v1213, 0
        %1228 = vmatprep.subr.bf16.mxu0 0
        %1229 = vmatpush1.bf16.xpose.msra.mxu0 %v1226
        %1230 = vmatprep.subr.bf16.mxu0 0
        %1231 = vmatpush1.bf16.xpose.msra.mxu0 0
        %1232 = vmatprep.subr.bf16.mxu0 0
        %1233 = vmatpush1.bf16.xpose.msra.mxu0 0
        %1234 = vmatprep.subr.bf16.mxu0 0
        %1235 = vmatpush1.bf16.xpose.msra.mxu0 0
        %1236 = vmatprep.subr.bf16.mxu0 0
        %1237 = vmatpush1.bf16.xpose.msra.mxu0 0
        %1238 = vmatprep.subr.bf16.mxu0 0
        %1239 = vmatpush1.bf16.xpose.msra.mxu0 0
        %1240 = vmatprep.subr.bf16.mxu0 0
        %1241 = vmatpush1.bf16.xpose.msra.mxu0 0
        %1242 = vmatprep.subr.bf16.mxu0 0
        %1243 = vmatpush1.bf16.xpose.msra.mxu0 0
        %1244 = vmatprep.subr.bf16.mxu0 0
        %1245 = vmatpush1.bf16.xpose.msra.mxu0 0
        %1246 = vmatprep.subr.bf16.mxu0 0
        %1247 = vmatpush1.bf16.xpose.msra.mxu0 0
        %1248 = vmatprep.subr.bf16.mxu0 0
        %1249 = vmatpush1.bf16.xpose.msra.mxu0 0
        %1250 = vmatprep.subr.bf16.mxu0 0
        %1251 = vmatpush1.bf16.xpose.msra.mxu0 0
        %1252 = vmatprep.subr.bf16.mxu0 0
        %1253 = vmatpush1.bf16.xpose.msra.mxu0 0
        %1254 = vmatprep.subr.bf16.mxu0 0
        %1255 = vmatpush1.bf16.xpose.msra.mxu0 0
        %1256 = vmatprep.subr.bf16.mxu0 0
        %1257 = vmatpush1.bf16.xpose.msra.mxu0 0
        %1258 = vmatprep.subr.bf16.mxu0 0
        %1259 = vmatpush1.bf16.xpose.msra.mxu0 0
        %1260 = vmatprep.mubr.bf16.mxu0 0
        %1261 = vmatmul.mubr.bf16.gmra.mrb[0].mxu0 %v1223
        %v1262 = vpop.f32.mrb[0].mxu0
        %v1263 = vadd.f32 0.0, %v1262
        %v1264 = vpop.f32.mrb[0].mxu0
        %v1265 = vpop.f32.mrb[0].mxu0
        %v1266 = vpop.f32.mrb[0].mxu0
        %1267 = vdwg.mxu0
        %v1269 = vsel %vm1221, %v1158, 0
        %v1272 = vsel %vm1221, %v1214, 0
        %1274 = vmatprep.subr.bf16.mxu0 0
        %1275 = vmatpush1.bf16.xpose.msra.mxu0 %v1272
        %1276 = vmatprep.subr.bf16.mxu0 0
        %1277 = vmatpush1.bf16.xpose.msra.mxu0 0
        %1278 = vmatprep.subr.bf16.mxu0 0
        %1279 = vmatpush1.bf16.xpose.msra.mxu0 0
        %1280 = vmatprep.subr.bf16.mxu0 0
        %1281 = vmatpush1.bf16.xpose.msra.mxu0 0
        %1282 = vmatprep.subr.bf16.mxu0 0
        %1283 = vmatpush1.bf16.xpose.msra.mxu0 0
        %1284 = vmatprep.subr.bf16.mxu0 0
        %1285 = vmatpush1.bf16.xpose.msra.mxu0 0
        %1286 = vmatprep.subr.bf16.mxu0 0
        %1287 = vmatpush1.bf16.xpose.msra.mxu0 0
        %1288 = vmatprep.subr.bf16.mxu0 0
        %1289 = vmatpush1.bf16.xpose.msra.mxu0 0
        %1290 = vmatprep.subr.bf16.mxu0 0
        %1291 = vmatpush1.bf16.xpose.msra.mxu0 0
        %1292 = vmatprep.subr.bf16.mxu0 0
        %1293 = vmatpush1.bf16.xpose.msra.mxu0 0
        %1294 = vmatprep.subr.bf16.mxu0 0
        %1295 = vmatpush1.bf16.xpose.msra.mxu0 0
        %1296 = vmatprep.subr.bf16.mxu0 0
        %1297 = vmatpush1.bf16.xpose.msra.mxu0 0
        %1298 = vmatprep.subr.bf16.mxu0 0
        %1299 = vmatpush1.bf16.xpose.msra.mxu0 0
        %1300 = vmatprep.subr.bf16.mxu0 0
        %1301 = vmatpush1.bf16.xpose.msra.mxu0 0
        %1302 = vmatprep.subr.bf16.mxu0 0
        %1303 = vmatpush1.bf16.xpose.msra.mxu0 0
        %1304 = vmatprep.subr.bf16.mxu0 0
        %1305 = vmatpush1.bf16.xpose.msra.mxu0 0
        %1306 = vmatprep.mubr.bf16.mxu0 0
        %1307 = vmatmul.mubr.bf16.gmra.mrb[0].mxu0 %v1269
        %v1308 = vpop.f32.mrb[0].mxu0
        %v1309 = vadd.f32 0.0, %v1308
        %v1310 = vpop.f32.mrb[0].mxu0
        %v1311 = vpop.f32.mrb[0].mxu0
        %v1312 = vpop.f32.mrb[0].mxu0
        %1313 = vdwg.mxu0
        %v1315 = vsel %vm1221, %v1159, 0
        %v1318 = vsel %vm1221, %v1215, 0
        %1320 = vmatprep.subr.bf16.mxu0 0
        %1321 = vmatpush1.bf16.xpose.msra.mxu0 %v1318
        %1322 = vmatprep.subr.bf16.mxu0 0
        %1323 = vmatpush1.bf16.xpose.msra.mxu0 0
        %1324 = vmatprep.subr.bf16.mxu0 0
        %1325 = vmatpush1.bf16.xpose.msra.mxu0 0
        %1326 = vmatprep.subr.bf16.mxu0 0
        %1327 = vmatpush1.bf16.xpose.msra.mxu0 0
        %1328 = vmatprep.subr.bf16.mxu0 0
        %1329 = vmatpush1.bf16.xpose.msra.mxu0 0
        %1330 = vmatprep.subr.bf16.mxu0 0
        %1331 = vmatpush1.bf16.xpose.msra.mxu0 0
        %1332 = vmatprep.subr.bf16.mxu0 0
        %1333 = vmatpush1.bf16.xpose.msra.mxu0 0
        %1334 = vmatprep.subr.bf16.mxu0 0
        %1335 = vmatpush1.bf16.xpose.msra.mxu0 0
        %1336 = vmatprep.subr.bf16.mxu0 0
        %1337 = vmatpush1.bf16.xpose.msra.mxu0 0
        %1338 = vmatprep.subr.bf16.mxu0 0
        %1339 = vmatpush1.bf16.xpose.msra.mxu0 0
        %1340 = vmatprep.subr.bf16.mxu0 0
        %1341 = vmatpush1.bf16.xpose.msra.mxu0 0
        %1342 = vmatprep.subr.bf16.mxu0 0
        %1343 = vmatpush1.bf16.xpose.msra.mxu0 0
        %1344 = vmatprep.subr.bf16.mxu0 0
        %1345 = vmatpush1.bf16.xpose.msra.mxu0 0
        %1346 = vmatprep.subr.bf16.mxu0 0
        %1347 = vmatpush1.bf16.xpose.msra.mxu0 0
        %1348 = vmatprep.subr.bf16.mxu0 0
        %1349 = vmatpush1.bf16.xpose.msra.mxu0 0
        %1350 = vmatprep.subr.bf16.mxu0 0
        %1351 = vmatpush1.bf16.xpose.msra.mxu0 0
        %1352 = vmatprep.mubr.bf16.mxu0 0
        %1353 = vmatmul.mubr.bf16.gmra.mrb[0].mxu0 %v1315
        %v1354 = vpop.f32.mrb[0].mxu0
        %v1355 = vadd.f32 0.0, %v1354
        %v1356 = vpop.f32.mrb[0].mxu0
        %v1357 = vpop.f32.mrb[0].mxu0
        %v1358 = vpop.f32.mrb[0].mxu0
        %1359 = vdwg.mxu0
        %v1361 = vsel %vm1221, %v1160, 0
        %v1364 = vsel %vm1221, %v1216, 0
        %1366 = vmatprep.subr.bf16.mxu0 0
        %1367 = vmatpush1.bf16.xpose.msra.mxu0 %v1364
        %1368 = vmatprep.subr.bf16.mxu0 0
        %1369 = vmatpush1.bf16.xpose.msra.mxu0 0
        %1370 = vmatprep.subr.bf16.mxu0 0
        %1371 = vmatpush1.bf16.xpose.msra.mxu0 0
        %1372 = vmatprep.subr.bf16.mxu0 0
        %1373 = vmatpush1.bf16.xpose.msra.mxu0 0
        %1374 = vmatprep.subr.bf16.mxu0 0
        %1375 = vmatpush1.bf16.xpose.msra.mxu0 0
        %1376 = vmatprep.subr.bf16.mxu0 0
        %1377 = vmatpush1.bf16.xpose.msra.mxu0 0
        %1378 = vmatprep.subr.bf16.mxu0 0
        %1379 = vmatpush1.bf16.xpose.msra.mxu0 0
        %1380 = vmatprep.subr.bf16.mxu0 0
        %1381 = vmatpush1.bf16.xpose.msra.mxu0 0
        %1382 = vmatprep.subr.bf16.mxu0 0
        %1383 = vmatpush1.bf16.xpose.msra.mxu0 0
        %1384 = vmatprep.subr.bf16.mxu0 0
        %1385 = vmatpush1.bf16.xpose.msra.mxu0 0
        %1386 = vmatprep.subr.bf16.mxu0 0
        %1387 = vmatpush1.bf16.xpose.msra.mxu0 0
        %1388 = vmatprep.subr.bf16.mxu0 0
        %1389 = vmatpush1.bf16.xpose.msra.mxu0 0
        %1390 = vmatprep.subr.bf16.mxu0 0
        %1391 = vmatpush1.bf16.xpose.msra.mxu0 0
        %1392 = vmatprep.subr.bf16.mxu0 0
        %1393 = vmatpush1.bf16.xpose.msra.mxu0 0
        %1394 = vmatprep.subr.bf16.mxu0 0
        %1395 = vmatpush1.bf16.xpose.msra.mxu0 0
        %1396 = vmatprep.subr.bf16.mxu0 0
        %1397 = vmatpush1.bf16.xpose.msra.mxu0 0
        %1398 = vmatprep.mubr.bf16.mxu0 0
        %1399 = vmatmul.mubr.bf16.gmra.mrb[0].mxu0 %v1361
        %v1400 = vpop.f32.mrb[0].mxu0
        %v1401 = vadd.f32 0.0, %v1400
        %v1402 = vpop.f32.mrb[0].mxu0
        %v1403 = vpop.f32.mrb[0].mxu0
        %v1404 = vpop.f32.mrb[0].mxu0
        %1405 = vdwg.mxu0
        %v1406 = vlaneseq
        %v1407 = vshrl.u32 %v1406, 7
        %v1408 = vlaneseq
        %v1409 = vand.u32 %v1408, 127
        %vm1410 = vcmp.le.s32.totalorder %v1409, %v1407
        %v1411 = vsel %vm1410, 1, 0
        %vm1412 = vcmp.eq.s32.totalorder %v1411, 1
        %v1413 = vsel %vm1412, %v1263, -1e+30
        %v1414 = vsel %vm1412, %v1309, -1e+30
        %v1415 = vsel %vm1412, %v1355, -1e+30
        %v1416 = vsel %vm1412, %v1401, -1e+30
        %v1417 = vsel %vm1221, %v1413, -inf
        %1418 = vmax.xlane.f32.xlu0 %v1417
        %v1419 = vpop.xlane.xlu0 %1418
        %v1420 = vsel %vm1221, %v1414, -inf
        %1421 = vmax.xlane.f32.xlu0 %v1420
        %v1422 = vpop.xlane.xlu0 %1421
        %v1423 = vsel %vm1221, %v1415, -inf
        %1424 = vmax.xlane.f32.xlu0 %v1423
        %v1425 = vpop.xlane.xlu0 %1424
        %v1426 = vsel %vm1221, %v1416, -inf
        %1427 = vmax.xlane.f32.xlu0 %v1426
        %v1428 = vpop.xlane.xlu0 %1427
        %v1429 = vsub.f32 %v1413, %v1419
        %v1430 = vsub.f32 %v1414, %v1422
        %v1431 = vsub.f32 %v1415, %v1425
        %v1432 = vsub.f32 %v1416, %v1428
        %v1433 = vmul.f32 %v1429, 1.442695
        %v1434 = vpow.pop %v1433
        %v1435 = vmul.f32 %v1430, 1.442695
        %v1436 = vpow.pop %v1435
        %v1437 = vmul.f32 %v1431, 1.442695
        %v1438 = vpow.pop %v1437
        %v1439 = vmul.f32 %v1432, 1.442695
        %v1440 = vpow.pop %v1439
        %v1441 = vsel %vm1221, %v1434, 0.0
        %1442 = vadd.xlane.f32.xlu0 %v1441
        %v1443 = vpop.xlane.xlu0 %1442
        %v1444 = vsel %vm1221, %v1436, 0.0
        %1445 = vadd.xlane.f32.xlu0 %v1444
        %v1446 = vpop.xlane.xlu0 %1445
        %v1447 = vsel %vm1221, %v1438, 0.0
        %1448 = vadd.xlane.f32.xlu0 %v1447
        %v1449 = vpop.xlane.xlu0 %1448
        %v1450 = vsel %vm1221, %v1440, 0.0
        %1451 = vadd.xlane.f32.xlu0 %v1450
        %v1452 = vpop.xlane.xlu0 %1451
        %v1453 = vrcp.pop %v1443
        %v1454 = vrcp.pop %v1446
        %v1455 = vrcp.pop %v1449
        %v1456 = vrcp.pop %v1452
        %v1457 = vmul.f32 %v1434, %v1453
        %v1458 = vmul.f32 %v1436, %v1454
        %v1459 = vmul.f32 %v1438, %v1455
        %v1460 = vmul.f32 %v1440, %v1456
        %v1461 = vpack.c.bf16 %v1457, %v1457
        %v1462 = vpack.c.bf16 %v1458, %v1458
        %v1463 = vpack.c.bf16 %v1459, %v1459
        %v1464 = vpack.c.bf16 %v1460, %v1460
        %v1466 = vsel %vm1221, %v1461, 0
        %vm1468 = vcmask 1043456
        %v1470 = vsel %vm1468, %v1217, 0
        %1472 = vmatprep.subr.bf16.mxu0 0
        %1473 = vmatpush1.bf16.msra.mxu0 %v1470
        %1474 = vmatprep.subr.bf16.mxu0 0
        %1475 = vmatpush1.bf16.msra.mxu0 0
        %1476 = vmatprep.subr.bf16.mxu0 0
        %1477 = vmatpush1.bf16.msra.mxu0 0
        %1478 = vmatprep.subr.bf16.mxu0 0
        %1479 = vmatpush1.bf16.msra.mxu0 0
        %1480 = vmatprep.subr.bf16.mxu0 0
        %1481 = vmatpush1.bf16.msra.mxu0 0
        %1482 = vmatprep.subr.bf16.mxu0 0
        %1483 = vmatpush1.bf16.msra.mxu0 0
        %1484 = vmatprep.subr.bf16.mxu0 0
        %1485 = vmatpush1.bf16.msra.mxu0 0
        %1486 = vmatprep.subr.bf16.mxu0 0
        %1487 = vmatpush1.bf16.msra.mxu0 0
        %1488 = vmatprep.subr.bf16.mxu0 0
        %1489 = vmatpush1.bf16.msra.mxu0 0
        %1490 = vmatprep.subr.bf16.mxu0 0
        %1491 = vmatpush1.bf16.msra.mxu0 0
        %1492 = vmatprep.subr.bf16.mxu0 0
        %1493 = vmatpush1.bf16.msra.mxu0 0
        %1494 = vmatprep.subr.bf16.mxu0 0
        %1495 = vmatpush1.bf16.msra.mxu0 0
        %1496 = vmatprep.subr.bf16.mxu0 0
        %1497 = vmatpush1.bf16.msra.mxu0 0
        %1498 = vmatprep.subr.bf16.mxu0 0
        %1499 = vmatpush1.bf16.msra.mxu0 0
        %1500 = vmatprep.subr.bf16.mxu0 0
        %1501 = vmatpush1.bf16.msra.mxu0 0
        %1502 = vmatprep.subr.bf16.mxu0 0
        %1503 = vmatpush1.bf16.msra.mxu0 0
        %1504 = vmatprep.mubr.bf16.mxu0 0
        %1505 = vmatmul.mubr.bf16.gmra.mrb[0].mxu0 %v1466
        %v1506 = vpop.f32.mrb[0].mxu0
        %v1507 = vadd.f32 0.0, %v1506
        %v1508 = vpop.f32.mrb[0].mxu0
        %v1509 = vpop.f32.mrb[0].mxu0
        %v1510 = vpop.f32.mrb[0].mxu0
        %1511 = vdwg.mxu0
        %v1513 = vsel %vm1221, %v1462, 0
        %v1516 = vsel %vm1468, %v1218, 0
        %1518 = vmatprep.subr.bf16.mxu0 0
        %1519 = vmatpush1.bf16.msra.mxu0 %v1516
        %1520 = vmatprep.subr.bf16.mxu0 0
        %1521 = vmatpush1.bf16.msra.mxu0 0
        %1522 = vmatprep.subr.bf16.mxu0 0
        %1523 = vmatpush1.bf16.msra.mxu0 0
        %1524 = vmatprep.subr.bf16.mxu0 0
        %1525 = vmatpush1.bf16.msra.mxu0 0
        %1526 = vmatprep.subr.bf16.mxu0 0
        %1527 = vmatpush1.bf16.msra.mxu0 0
        %1528 = vmatprep.subr.bf16.mxu0 0
        %1529 = vmatpush1.bf16.msra.mxu0 0
        %1530 = vmatprep.subr.bf16.mxu0 0
        %1531 = vmatpush1.bf16.msra.mxu0 0
        %1532 = vmatprep.subr.bf16.mxu0 0
        %1533 = vmatpush1.bf16.msra.mxu0 0
        %1534 = vmatprep.subr.bf16.mxu0 0
        %1535 = vmatpush1.bf16.msra.mxu0 0
        %1536 = vmatprep.subr.bf16.mxu0 0
        %1537 = vmatpush1.bf16.msra.mxu0 0
        %1538 = vmatprep.subr.bf16.mxu0 0
        %1539 = vmatpush1.bf16.msra.mxu0 0
        %1540 = vmatprep.subr.bf16.mxu0 0
        %1541 = vmatpush1.bf16.msra.mxu0 0
        %1542 = vmatprep.subr.bf16.mxu0 0
        %1543 = vmatpush1.bf16.msra.mxu0 0
        %1544 = vmatprep.subr.bf16.mxu0 0
        %1545 = vmatpush1.bf16.msra.mxu0 0
        %1546 = vmatprep.subr.bf16.mxu0 0
        %1547 = vmatpush1.bf16.msra.mxu0 0
        %1548 = vmatprep.subr.bf16.mxu0 0
        %1549 = vmatpush1.bf16.msra.mxu0 0
        %1550 = vmatprep.mubr.bf16.mxu0 0
        %1551 = vmatmul.mubr.bf16.gmra.mrb[0].mxu0 %v1513
        %v1552 = vpop.f32.mrb[0].mxu0
        %v1553 = vadd.f32 0.0, %v1552
        %v1554 = vpop.f32.mrb[0].mxu0
        %v1555 = vpop.f32.mrb[0].mxu0
        %v1556 = vpop.f32.mrb[0].mxu0
        %1557 = vdwg.mxu0
        %v1559 = vsel %vm1221, %v1463, 0
        %v1562 = vsel %vm1468, %v1219, 0
        %1564 = vmatprep.subr.bf16.mxu0 0
        %1565 = vmatpush1.bf16.msra.mxu0 %v1562
        %1566 = vmatprep.subr.bf16.mxu0 0
        %1567 = vmatpush1.bf16.msra.mxu0 0
        %1568 = vmatprep.subr.bf16.mxu0 0
        %1569 = vmatpush1.bf16.msra.mxu0 0
        %1570 = vmatprep.subr.bf16.mxu0 0
        %1571 = vmatpush1.bf16.msra.mxu0 0
        %1572 = vmatprep.subr.bf16.mxu0 0
        %1573 = vmatpush1.bf16.msra.mxu0 0
        %1574 = vmatprep.subr.bf16.mxu0 0
        %1575 = vmatpush1.bf16.msra.mxu0 0
        %1576 = vmatprep.subr.bf16.mxu0 0
        %1577 = vmatpush1.bf16.msra.mxu0 0
        %1578 = vmatprep.subr.bf16.mxu0 0
        %1579 = vmatpush1.bf16.msra.mxu0 0
        %1580 = vmatprep.subr.bf16.mxu0 0
        %1581 = vmatpush1.bf16.msra.mxu0 0
        %1582 = vmatprep.subr.bf16.mxu0 0
        %1583 = vmatpush1.bf16.msra.mxu0 0
        %1584 = vmatprep.subr.bf16.mxu0 0
        %1585 = vmatpush1.bf16.msra.mxu0 0
        %1586 = vmatprep.subr.bf16.mxu0 0
        %1587 = vmatpush1.bf16.msra.mxu0 0
        %1588 = vmatprep.subr.bf16.mxu0 0
        %1589 = vmatpush1.bf16.msra.mxu0 0
        %1590 = vmatprep.subr.bf16.mxu0 0
        %1591 = vmatpush1.bf16.msra.mxu0 0
        %1592 = vmatprep.subr.bf16.mxu0 0
        %1593 = vmatpush1.bf16.msra.mxu0 0
        %1594 = vmatprep.subr.bf16.mxu0 0
        %1595 = vmatpush1.bf16.msra.mxu0 0
        %1596 = vmatprep.mubr.bf16.mxu0 0
        %1597 = vmatmul.mubr.bf16.gmra.mrb[0].mxu0 %v1559
        %v1598 = vpop.f32.mrb[0].mxu0
        %v1599 = vadd.f32 0.0, %v1598
        %v1600 = vpop.f32.mrb[0].mxu0
        %v1601 = vpop.f32.mrb[0].mxu0
        %v1602 = vpop.f32.mrb[0].mxu0
        %1603 = vdwg.mxu0
        %v1605 = vsel %vm1221, %v1464, 0
        %v1608 = vsel %vm1468, %v1220, 0
        %1610 = vmatprep.subr.bf16.mxu0 0
        %1611 = vmatpush1.bf16.msra.mxu0 %v1608
        %1612 = vmatprep.subr.bf16.mxu0 0
        %1613 = vmatpush1.bf16.msra.mxu0 0
        %1614 = vmatprep.subr.bf16.mxu0 0
        %1615 = vmatpush1.bf16.msra.mxu0 0
        %1616 = vmatprep.subr.bf16.mxu0 0
        %1617 = vmatpush1.bf16.msra.mxu0 0
        %1618 = vmatprep.subr.bf16.mxu0 0
        %1619 = vmatpush1.bf16.msra.mxu0 0
        %1620 = vmatprep.subr.bf16.mxu0 0
        %1621 = vmatpush1.bf16.msra.mxu0 0
        %1622 = vmatprep.subr.bf16.mxu0 0
        %1623 = vmatpush1.bf16.msra.mxu0 0
        %1624 = vmatprep.subr.bf16.mxu0 0
        %1625 = vmatpush1.bf16.msra.mxu0 0
        %1626 = vmatprep.subr.bf16.mxu0 0
        %1627 = vmatpush1.bf16.msra.mxu0 0
        %1628 = vmatprep.subr.bf16.mxu0 0
        %1629 = vmatpush1.bf16.msra.mxu0 0
        %1630 = vmatprep.subr.bf16.mxu0 0
        %1631 = vmatpush1.bf16.msra.mxu0 0
        %1632 = vmatprep.subr.bf16.mxu0 0
        %1633 = vmatpush1.bf16.msra.mxu0 0
        %1634 = vmatprep.subr.bf16.mxu0 0
        %1635 = vmatpush1.bf16.msra.mxu0 0
        %1636 = vmatprep.subr.bf16.mxu0 0
        %1637 = vmatpush1.bf16.msra.mxu0 0
        %1638 = vmatprep.subr.bf16.mxu0 0
        %1639 = vmatpush1.bf16.msra.mxu0 0
        %1640 = vmatprep.subr.bf16.mxu0 0
        %1641 = vmatpush1.bf16.msra.mxu0 0
        %1642 = vmatprep.mubr.bf16.mxu0 0
        %1643 = vmatmul.mubr.bf16.gmra.mrb[0].mxu0 %v1605
        %v1644 = vpop.f32.mrb[0].mxu0
        %v1645 = vadd.f32 0.0, %v1644
        %v1646 = vpop.f32.mrb[0].mxu0
        %v1647 = vpop.f32.mrb[0].mxu0
        %v1648 = vpop.f32.mrb[0].mxu0
        %1649 = vdwg.mxu0
        %v1650 = vcombine.low %v1507, %v1599
        %v1651 = vcombine.high %v1507, %v1599
        %v1653 = vunpack.c.l.s4 1983009808
        %v1654 = vunpack.c.0.s8 %v1653
        %v1655 = vlaneseq
        %v1656 = vshrl.u32 %v1655, 7
        %v1657 = vsub.s32 %v1654, %v1656
        %v1658 = vrot.slane %v1650, %v1657
        %v1660 = vunpack.c.l.s4 1983009808
        %v1661 = vunpack.c.0.s8 %v1660
        %v1662 = vlaneseq
        %v1663 = vshrl.u32 %v1662, 7
        %v1664 = vsub.s32 %v1661, %v1663
        %v1665 = vrot.slane %v1651, %v1664
        %v1666 = vcombine.low %v1553, %v1645
        %v1667 = vcombine.high %v1553, %v1645
        %v1669 = vunpack.c.l.s4 1983009808
        %v1670 = vunpack.c.0.s8 %v1669
        %v1671 = vlaneseq
        %v1672 = vshrl.u32 %v1671, 7
        %v1673 = vsub.s32 %v1670, %v1672
        %v1674 = vrot.slane %v1666, %v1673
        %v1676 = vunpack.c.l.s4 1983009808
        %v1677 = vunpack.c.0.s8 %v1676
        %v1678 = vlaneseq
        %v1679 = vshrl.u32 %v1678, 7
        %v1680 = vsub.s32 %v1677, %v1679
        %v1681 = vrot.slane %v1667, %v1680
        %v1682 = vcombine.low %v1658, %v1674
        %v1683 = vcombine.high %v1658, %v1674
        %v1685 = vunpack.c.l.s4 1934713408
        %v1686 = vunpack.c.0.s8 %v1685
        %v1687 = vlaneseq
        %v1688 = vshrl.u32 %v1687, 7
        %v1689 = vsub.s32 %v1686, %v1688
        %v1690 = vrot.slane %v1682, %v1689
        %v1692 = vunpack.c.l.s4 1934713408
        %v1693 = vunpack.c.0.s8 %v1692
        %v1694 = vlaneseq
        %v1695 = vshrl.u32 %v1694, 7
        %v1696 = vsub.s32 %v1693, %v1695
        %v1697 = vrot.slane %v1683, %v1696
        %v1698 = vcombine.low %v1665, %v1681
        %v1699 = vcombine.high %v1665, %v1681
        %v1701 = vunpack.c.l.s4 1934713408
        %v1702 = vunpack.c.0.s8 %v1701
        %v1703 = vlaneseq
        %v1704 = vshrl.u32 %v1703, 7
        %v1705 = vsub.s32 %v1702, %v1704
        %v1706 = vrot.slane %v1698, %v1705
        %v1708 = vunpack.c.l.s4 1934713408
        %v1709 = vunpack.c.0.s8 %v1708
        %v1710 = vlaneseq
        %v1711 = vshrl.u32 %v1710, 7
        %v1712 = vsub.s32 %v1709, %v1711
        %v1713 = vrot.slane %v1699, %v1712
        %v1714 = vcombine.high %v1690, 0.0
        %v1715 = vcombine.high %v1697, 0.0
        %v1716 = vcombine.high %v1706, 0.0
        %v1717 = vcombine.high %v1713, 0.0
        %v1718 = vcombine.low %v1690, %v1697
        %v1720 = vunpack.c.l.s4 1983009808
        %v1721 = vunpack.c.0.s8 %v1720
        %v1722 = vlaneseq
        %v1723 = vshrl.u32 %v1722, 7
        %v1724 = vsub.s32 %v1721, %v1723
        %v1725 = vrot.slane %v1718, %v1724
        %v1726 = vcombine.low %v1714, %v1715
        %v1728 = vunpack.c.l.s4 1983009808
        %v1729 = vunpack.c.0.s8 %v1728
        %v1730 = vlaneseq
        %v1731 = vshrl.u32 %v1730, 7
        %v1732 = vsub.s32 %v1729, %v1731
        %v1733 = vrot.slane %v1726, %v1732
        %v1734 = vcombine.low %v1706, %v1713
        %v1736 = vunpack.c.l.s4 1983009808
        %v1737 = vunpack.c.0.s8 %v1736
        %v1738 = vlaneseq
        %v1739 = vshrl.u32 %v1738, 7
        %v1740 = vsub.s32 %v1737, %v1739
        %v1741 = vrot.slane %v1734, %v1740
        %v1742 = vcombine.low %v1716, %v1717
        %v1744 = vunpack.c.l.s4 1983009808
        %v1745 = vunpack.c.0.s8 %v1744
        %v1746 = vlaneseq
        %v1747 = vshrl.u32 %v1746, 7
        %v1748 = vsub.s32 %v1745, %v1747
        %v1749 = vrot.slane %v1742, %v1748
        %v1750 = vcombine.low %v1725, %v1733
        %v1751 = vcombine.high %v1725, %v1733
        %v1753 = vunpack.c.l.s4 1934713408
        %v1754 = vunpack.c.0.s8 %v1753
        %v1755 = vlaneseq
        %v1756 = vshrl.u32 %v1755, 7
        %v1757 = vsub.s32 %v1754, %v1756
        %v1758 = vrot.slane %v1750, %v1757
        %v1760 = vunpack.c.l.s4 1934713408
        %v1761 = vunpack.c.0.s8 %v1760
        %v1762 = vlaneseq
        %v1763 = vshrl.u32 %v1762, 7
        %v1764 = vsub.s32 %v1761, %v1763
        %v1765 = vrot.slane %v1751, %v1764
        %v1766 = vcombine.low %v1741, %v1749
        %v1767 = vcombine.high %v1741, %v1749
        %v1769 = vunpack.c.l.s4 1934713408
        %v1770 = vunpack.c.0.s8 %v1769
        %v1771 = vlaneseq
        %v1772 = vshrl.u32 %v1771, 7
        %v1773 = vsub.s32 %v1770, %v1772
        %v1774 = vrot.slane %v1766, %v1773
        %v1776 = vunpack.c.l.s4 1934713408
        %v1777 = vunpack.c.0.s8 %v1776
        %v1778 = vlaneseq
        %v1779 = vshrl.u32 %v1778, 7
        %v1780 = vsub.s32 %v1777, %v1779
        %v1781 = vrot.slane %v1767, %v1780
        %v1782 = vcombine.low %v1758, %v1774
        %v1783 = vcombine.high %v1758, %v1774
        %v1784 = vcombine.low %v1765, %v1781
        %v1785 = vcombine.high %v1765, %v1781
        %1787 = vrot.lane.b32.xlu0 %v1783, 8
        %v1788 = vpop.permute.xlu0 %1787
        %1791 = vrot.lane.b32.xlu0 %v1784, 16
        %v1792 = vpop.permute.xlu0 %1791
        %1795 = vrot.lane.b32.xlu0 %v1785, 24
        %v1796 = vpop.permute.xlu0 %1795
        %v1798 = vsel %vm1221, %v1782, %v1788
        %vm1799 = vcmask 130048
        %v1800 = vsel %vm1799, %v1798, %v1792
        %vm1801 = vcmask 195584
        %v1802 = vsel %vm1801, %v1800, %v1796
        %v1803 = vld [vmem:[#allocation5] sm:$0xf]
        %v1804 = vld [vmem:[#allocation5 + $0x4] sm:$0xf]
        %v1805 = vld [vmem:[#allocation5 + $0x8] sm:$0xf]
        %v1806 = vld [vmem:[#allocation5 + $0xc] sm:$0xf]
        %v1807 = vpack.c.bf16 %v1802, %v1802
        %v1812 = vunpack.c.l.b16 %v1803
        %v1813 = vunpack.c.l.b16 %v1804
        %v1814 = vunpack.c.l.b16 %v1805
        %v1815 = vunpack.c.l.b16 %v1806
        %v1816 = vpack.c.b16 %v1813, %v1812
        %v1817 = vpack.c.b16 %v1815, %v1814
        %v1821 = vsel %vm472, %v1807, 0
        %1823 = vmatprep.subr.bf16.mxu0 0
        %1824 = vmatpush1.bf16.msra.mxu0 %v1816
        %1825 = vmatprep.subr.bf16.mxu0 0
        %1826 = vmatpush1.bf16.msra.mxu0 %v1817
        %1827 = vmatprep.subr.bf16.mxu0 0
        %1828 = vmatpush1.bf16.msra.mxu0 0
        %1829 = vmatprep.subr.bf16.mxu0 0
        %1830 = vmatpush1.bf16.msra.mxu0 0
        %1831 = vmatprep.subr.bf16.mxu0 0
        %1832 = vmatpush1.bf16.msra.mxu0 0
        %1833 = vmatprep.subr.bf16.mxu0 0
        %1834 = vmatpush1.bf16.msra.mxu0 0
        %1835 = vmatprep.subr.bf16.mxu0 0
        %1836 = vmatpush1.bf16.msra.mxu0 0
        %1837 = vmatprep.subr.bf16.mxu0 0
        %1838 = vmatpush1.bf16.msra.mxu0 0
        %1839 = vmatprep.subr.bf16.mxu0 0
        %1840 = vmatpush1.bf16.msra.mxu0 0
        %1841 = vmatprep.subr.bf16.mxu0 0
        %1842 = vmatpush1.bf16.msra.mxu0 0
        %1843 = vmatprep.subr.bf16.mxu0 0
        %1844 = vmatpush1.bf16.msra.mxu0 0
        %1845 = vmatprep.subr.bf16.mxu0 0
        %1846 = vmatpush1.bf16.msra.mxu0 0
        %1847 = vmatprep.subr.bf16.mxu0 0
        %1848 = vmatpush1.bf16.msra.mxu0 0
        %1849 = vmatprep.subr.bf16.mxu0 0
        %1850 = vmatpush1.bf16.msra.mxu0 0
        %1851 = vmatprep.subr.bf16.mxu0 0
        %1852 = vmatpush1.bf16.msra.mxu0 0
        %1853 = vmatprep.subr.bf16.mxu0 0
        %1854 = vmatpush1.bf16.msra.mxu0 0
        %1855 = vmatprep.mubr.bf16.mxu0 0
        %1856 = vmatmul.mubr.bf16.gmra.mrb[0].mxu0 %v1821
        %v1857 = vpop.f32.mrb[0].mxu0
        %v1858 = vadd.f32 0.0, %v1857
        %v1859 = vpop.f32.mrb[0].mxu0
        %v1860 = vpop.f32.mrb[0].mxu0
        %v1861 = vpop.f32.mrb[0].mxu0
        %1862 = vdwg.mxu0
        %v1863 = vadd.f32 %v469, %v1858
        %v1864 = vld [vmem:[%s6] sm:$0x1]
        %v1865 = vmul.f32 %v1863, %v1863
        %v1866 = vsel %vm472, %v1865, 0.0
        %1867 = vadd.xlane.f32.xlu0 %v1866
        %v1868 = vpop.xlane.xlu0 %1867
        %v1869 = vmul.f32 %v1868, %v476
        %v1870 = vadd.f32 %v1869, 1e-06
        %v1871 = vrsqrt.pop %v1870
        %v1872 = vmul.f32 %v1863, %v1871
        %v1874 = vlaneseq
        %v1875 = vshrl.u32 %v1874, 7
        %v1876 = vsub.s32 0, %v1875
        %v1877 = vrot.slane %v1864, %v1876
        %v1879 = vmul.f32 %v1872, %v1877
        %v1880 = vld [vmem:[#allocation7] sm:$0xf]
        %v1881 = vld [vmem:[#allocation7 + $0x4] sm:$0xf]
        %v1882 = vld [vmem:[#allocation7 + $0x8] sm:$0xf]
        %v1883 = vld [vmem:[#allocation7 + $0xc] sm:$0xf]
        %v1884 = vpack.c.bf16 %v1879, %v1879
        %v1889 = vunpack.c.l.b16 %v1880
        %v1890 = vunpack.c.l.b16 %v1881
        %v1891 = vunpack.c.l.b16 %v1882
        %v1892 = vunpack.c.l.b16 %v1883
        %v1893 = vpack.c.b16 %v1890, %v1889
        %v1894 = vpack.c.b16 %v1892, %v1891
        %v1898 = vsel %vm472, %v1884, 0
        %1900 = vmatprep.subr.bf16.mxu0 0
        %1901 = vmatpush1.bf16.msra.mxu0 %v1893
        %1902 = vmatprep.subr.bf16.mxu0 0
        %1903 = vmatpush1.bf16.msra.mxu0 %v1894
        %1904 = vmatprep.subr.bf16.mxu0 0
        %1905 = vmatpush1.bf16.msra.mxu0 0
        %1906 = vmatprep.subr.bf16.mxu0 0
        %1907 = vmatpush1.bf16.msra.mxu0 0
        %1908 = vmatprep.subr.bf16.mxu0 0
        %1909 = vmatpush1.bf16.msra.mxu0 0
        %1910 = vmatprep.subr.bf16.mxu0 0
        %1911 = vmatpush1.bf16.msra.mxu0 0
        %1912 = vmatprep.subr.bf16.mxu0 0
        %1913 = vmatpush1.bf16.msra.mxu0 0
        %1914 = vmatprep.subr.bf16.mxu0 0
        %1915 = vmatpush1.bf16.msra.mxu0 0
        %1916 = vmatprep.subr.bf16.mxu0 0
        %1917 = vmatpush1.bf16.msra.mxu0 0
        %1918 = vmatprep.subr.bf16.mxu0 0
        %1919 = vmatpush1.bf16.msra.mxu0 0
        %1920 = vmatprep.subr.bf16.mxu0 0
        %1921 = vmatpush1.bf16.msra.mxu0 0
        %1922 = vmatprep.subr.bf16.mxu0 0
        %1923 = vmatpush1.bf16.msra.mxu0 0
        %1924 = vmatprep.subr.bf16.mxu0 0
        %1925 = vmatpush1.bf16.msra.mxu0 0
        %1926 = vmatprep.subr.bf16.mxu0 0
        %1927 = vmatpush1.bf16.msra.mxu0 0
        %1928 = vmatprep.subr.bf16.mxu0 0
        %1929 = vmatpush1.bf16.msra.mxu0 0
        %1930 = vmatprep.subr.bf16.mxu0 0
        %1931 = vmatpush1.bf16.msra.mxu0 0
        %1932 = vmatprep.mubr.bf16.mxu0 0
        %1933 = vmatmul.mubr.bf16.gmra.mrb[0].mxu0 %v1898
        %v1934 = vpop.f32.mrb[0].mxu0
        %v1935 = vadd.f32 0.0, %v1934
        %v1936 = vpop.f32.mrb[0].mxu0
        %v1937 = vpop.f32.mrb[0].mxu0
        %v1938 = vpop.f32.mrb[0].mxu0
        %1939 = vdwg.mxu0
        %v1940 = vld [vmem:[#allocation8] sm:$0xf]
        %v1941 = vld [vmem:[#allocation8 + $0x4] sm:$0xf]
        %v1942 = vld [vmem:[#allocation8 + $0x8] sm:$0xf]
        %v1943 = vld [vmem:[#allocation8 + $0xc] sm:$0xf]
        %v1948 = vunpack.c.l.b16 %v1940
        %v1949 = vunpack.c.l.b16 %v1941
        %v1950 = vunpack.c.l.b16 %v1942
        %v1951 = vunpack.c.l.b16 %v1943
        %v1952 = vpack.c.b16 %v1949, %v1948
        %v1953 = vpack.c.b16 %v1951, %v1950
        %1956 = vmatprep.subr.bf16.mxu0 0
        %1957 = vmatpush1.bf16.msra.mxu0 %v1952
        %1958 = vmatprep.subr.bf16.mxu0 0
        %1959 = vmatpush1.bf16.msra.mxu0 %v1953
        %1960 = vmatprep.subr.bf16.mxu0 0
        %1961 = vmatpush1.bf16.msra.mxu0 0
        %1962 = vmatprep.subr.bf16.mxu0 0
        %1963 = vmatpush1.bf16.msra.mxu0 0
        %1964 = vmatprep.subr.bf16.mxu0 0
        %1965 = vmatpush1.bf16.msra.mxu0 0
        %1966 = vmatprep.subr.bf16.mxu0 0
        %1967 = vmatpush1.bf16.msra.mxu0 0
        %1968 = vmatprep.subr.bf16.mxu0 0
        %1969 = vmatpush1.bf16.msra.mxu0 0
        %1970 = vmatprep.subr.bf16.mxu0 0
        %1971 = vmatpush1.bf16.msra.mxu0 0
        %1972 = vmatprep.subr.bf16.mxu0 0
        %1973 = vmatpush1.bf16.msra.mxu0 0
        %1974 = vmatprep.subr.bf16.mxu0 0
        %1975 = vmatpush1.bf16.msra.mxu0 0
        %1976 = vmatprep.subr.bf16.mxu0 0
        %1977 = vmatpush1.bf16.msra.mxu0 0
        %1978 = vmatprep.subr.bf16.mxu0 0
        %1979 = vmatpush1.bf16.msra.mxu0 0
        %1980 = vmatprep.subr.bf16.mxu0 0
        %1981 = vmatpush1.bf16.msra.mxu0 0
        %1982 = vmatprep.subr.bf16.mxu0 0
        %1983 = vmatpush1.bf16.msra.mxu0 0
        %1984 = vmatprep.subr.bf16.mxu0 0
        %1985 = vmatpush1.bf16.msra.mxu0 0
        %1986 = vmatprep.subr.bf16.mxu0 0
        %1987 = vmatpush1.bf16.msra.mxu0 0
        %1988 = vmatprep.mubr.bf16.mxu0 0
        %1989 = vmatmul.mubr.bf16.gmra.mrb[0].mxu0 %v1898
        %v1990 = vpop.f32.mrb[0].mxu0
        %v1991 = vadd.f32 0.0, %v1990
        %v1992 = vpop.f32.mrb[0].mxu0
        %v1993 = vpop.f32.mrb[0].mxu0
        %v1994 = vpop.f32.mrb[0].mxu0
        %1995 = vdwg.mxu0
        %v1996 = vxor.u32 %v1935, 2147483648
        %v1997 = vmul.f32 %v1996, 1.442695
        %v1998 = vpow.pop %v1997
        %v1999 = vadd.f32 %v1998, 1.0
        %v2000 = vrcp.pop %v1999
        %v2001 = vmul.f32 1.0, %v2000
        %v2002 = vmul.f32 %v1935, %v2001
        %v2003 = vmul.f32 %v2002, %v1991
        %v2004 = vld [vmem:[%s9] sm:$0xf]
        %v2005 = vld [vmem:[%s9 + $0x4] sm:$0xf]
        %v2006 = vld [vmem:[%s9 + $0x8] sm:$0xf]
        %v2007 = vld [vmem:[%s9 + $0xc] sm:$0xf]
        %v2008 = vld [vmem:[%s9 + $0x10] sm:$0xf]
        %v2009 = vld [vmem:[%s9 + $0x14] sm:$0xf]
        %v2010 = vld [vmem:[%s9 + $0x18] sm:$0xf]
        %v2011 = vld [vmem:[%s9 + $0x1c] sm:$0xf]
        %v2012 = vpack.c.bf16 %v2003, %v2003
        %v2021 = vunpack.c.l.b16 %v2004
        %v2022 = vunpack.c.l.b16 %v2005
        %v2023 = vunpack.c.l.b16 %v2006
        %v2024 = vunpack.c.l.b16 %v2007
        %v2025 = vunpack.c.l.b16 %v2008
        %v2026 = vunpack.c.l.b16 %v2009
        %v2027 = vunpack.c.l.b16 %v2010
        %v2028 = vunpack.c.l.b16 %v2011
        %v2029 = vpack.c.b16 %v2022, %v2021
        %v2030 = vpack.c.b16 %v2024, %v2023
        %v2031 = vpack.c.b16 %v2026, %v2025
        %v2032 = vpack.c.b16 %v2028, %v2027
        %vm2037 = vcmask 523264
        %v2039 = vsel %vm2037, %v2012, 0
        %2041 = vmatprep.subr.bf16.mxu0 0
        %2042 = vmatpush1.bf16.msra.mxu0 %v2029
        %2043 = vmatprep.subr.bf16.mxu0 0
        %2044 = vmatpush1.bf16.msra.mxu0 %v2030
        %2045 = vmatprep.subr.bf16.mxu0 0
        %2046 = vmatpush1.bf16.msra.mxu0 %v2031
        %2047 = vmatprep.subr.bf16.mxu0 0
        %2048 = vmatpush1.bf16.msra.mxu0 %v2032
        %2049 = vmatprep.subr.bf16.mxu0 0
        %2050 = vmatpush1.bf16.msra.mxu0 0
        %2051 = vmatprep.subr.bf16.mxu0 0
        %2052 = vmatpush1.bf16.msra.mxu0 0
        %2053 = vmatprep.subr.bf16.mxu0 0
        %2054 = vmatpush1.bf16.msra.mxu0 0
        %2055 = vmatprep.subr.bf16.mxu0 0
        %2056 = vmatpush1.bf16.msra.mxu0 0
        %2057 = vmatprep.subr.bf16.mxu0 0
        %2058 = vmatpush1.bf16.msra.mxu0 0
        %2059 = vmatprep.subr.bf16.mxu0 0
        %2060 = vmatpush1.bf16.msra.mxu0 0
        %2061 = vmatprep.subr.bf16.mxu0 0
        %2062 = vmatpush1.bf16.msra.mxu0 0
        %2063 = vmatprep.subr.bf16.mxu0 0
        %2064 = vmatpush1.bf16.msra.mxu0 0
        %2065 = vmatprep.subr.bf16.mxu0 0
        %2066 = vmatpush1.bf16.msra.mxu0 0
        %2067 = vmatprep.subr.bf16.mxu0 0
        %2068 = vmatpush1.bf16.msra.mxu0 0
        %2069 = vmatprep.subr.bf16.mxu0 0
        %2070 = vmatpush1.bf16.msra.mxu0 0
        %2071 = vmatprep.subr.bf16.mxu0 0
        %2072 = vmatpush1.bf16.msra.mxu0 0
        %2073 = vmatprep.mubr.bf16.mxu0 0
        %2074 = vmatmul.mubr.bf16.gmra.mrb[0].mxu0 %v2039
        %v2075 = vpop.f32.mrb[0].mxu0
        %v2076 = vadd.f32 0.0, %v2075
        %v2077 = vpop.f32.mrb[0].mxu0
        %v2078 = vpop.f32.mrb[0].mxu0
        %v2079 = vpop.f32.mrb[0].mxu0
        %2080 = vdwg.mxu0
        %v2081 = vadd.f32 %v1863, %v2076
        %2082 = vst.msk [vmem:[%s463] sm:$0xff] %vm472, %v2081
        %s2083 = sand.u32 %s294, 1
        %s2084 = scalar_lea.sflag [#allocation4], %s2083
        %s2085 = sand.u32 %s294, 1
        %s2086 = smul.addr %s2085, 8
        %s2087 = scalar_lea.vmem [#allocation10], %s2086
        // Predicated region
        $region85: #{tpu_custom_call.1} parent=67 // pred_check
          %p2088 = pneg %p304
        $region86: #{tpu_custom_call.1} parent=67 // pred_check_branch
          %2090 = sbr.rel (%p2088) target = $region88
        $region87: #{tpu_custom_call.1} parent=67 // pred_region
          %s2092 = ssub.s32 128, 128
          %2093 = vsyncadd %s2084, %s2092
          %s2094 = smul.addr %s29, 128
          %s2095 = scalar_lea.hbm %s12, %s2094
          %s2097 = sshll.u32 %s2087, 4
          %s2098 = int_to_ptr.vmem [resolvable:$true] %s2097
          %2100 = dma.vmem_to_hbm [thread:$0]  %s2098, 128, %s2095, %s2084
        $region88: #{tpu_custom_call.1} parent=67 // pred_fallthru
          _
      $region68: #{tpu_custom_call.1} parent=5 // pred_fallthru
        _
      %p2101 = scmp.le.s32.totalorder 2, %s24
      // Predicated region
      $region89: #{tpu_custom_call.1} parent=5 // pred_check
        %p2102 = pneg %p2101
      $region90: #{tpu_custom_call.1} parent=5 // pred_check_branch
        %2104 = sbr.rel (%p2102) target = $region92
      $region91: #{tpu_custom_call.1} parent=5 // pred_region
        %s2105 = ssub.s32 %s24, 2
        // Predicated region
        $region93: #{tpu_custom_call.1} parent=91 // pred_check
          %p2106 = pneg %p310
        $region94: #{tpu_custom_call.1} parent=91 // pred_check_branch
          %2108 = sbr.rel (%p2106) target = $region96
        $region95: #{tpu_custom_call.1} parent=91 // pred_region
          %s2109 = sand.u32 %s295, 1
          %s2110 = scalar_lea.sflag [#allocation4], %s2109
          %s2111 = sand.u32 %s295, 1
          %s2112 = smul.addr %s2111, 8
          %s2113 = scalar_lea.vmem [#allocation10], %s2112
          %2114 = dma.done %s2110, 128
        $region96: #{tpu_custom_call.1} parent=91 // pred_fallthru
          _
      $region92: #{tpu_custom_call.1} parent=5 // pred_fallthru
        _
    $region6: #{tpu_custom_call.1} parent=1 // loop_footer
      %s28 = sadd.s32 1, %s24
    $region7: #{tpu_custom_call.1} parent=1 // loop_footer_branch
      %23 = sbr.rel target = $region3
    $region8: #{tpu_custom_call.1} parent=1 // loop_exit
      _
    %2115 = vsyncpa [#allocation3], 1
    %s2116 = scalar_lea.sflag [#allocation3], 1
    %2117 = vsyncpa %s2116, 1
    %2118 = vsyncpa [#allocation6], 1
    %2119 = vsyncpa [#allocation9], 1
    %2120 = vsyncpa [#allocation4], 1
    %s2121 = scalar_lea.sflag [#allocation4], 1
    %2122 = vsyncpa %s2121, 1

</llo_original>
